<compile_context>
chip_gen: v5e
topology: v5e:2x2
jax: 0.10.0
libtpu: 0.0.40
codegen_flags: <defaults>
</compile_context>

<pallas_src>
import jax
import jax.numpy as jnp
from jax.experimental import pallas as pl
from jax.experimental.pallas import tpu as pltpu

# ---------------- configuration (args.*) ----------------
HIDDEN_DIM = 32     # args.hidden_dim
NUM_TOKENS = 8      # args.num_tokens
NUM_FRAME = 8       # args.num_frame
NUM_CLASS = 8       # args.num_activities
NHEADS_AGG = 4      # args.nheads_agg
BACKBONE_CH = 16    # backbone.num_channels (stub)

D = HIDDEN_DIM
K = NUM_TOKENS
T = NUM_FRAME
LANE = 128          # lane-padded logits width (dense store)

assert D % NHEADS_AGG == 0, "hidden_dim must be divisible by nheads_agg"
DH = D // NHEADS_AGG


# ---------------- fused per-batch-element kernel ----------------
def _dfgar_kernel(feat_ref, wf_ref, vec_ref, pos_ref, qe_ref,
                  c1w_ref, c2w_ref, iw_ref, ib_ref, ow_ref,
                  cw_ref, cb_ref, o_ref, pad_ref):
    """Whole DFGAR forward for one batch element (channel-last layouts).

    feat_ref: [T, HW, 3]    pooled channel-last backbone input (stub)
    vec_ref:  [8, D]        slab: [bf, c1b, c2b, n1g, n1b, n2g, n2b, out_b]
    pad_ref:  [T+2, K, D]   VMEM scratch reused as zero-padded conv1d input
    o_ref:    [1, LANE]     lane-padded logits for this batch element
    """
    feat = feat_ref[...]                              # [T, HW, 3]
    vec = vec_ref[...]                                # [8, D]
    bf, c1b, c2b = vec[0:1], vec[1:2], vec[2:3]
    n1g, n1b = vec[3:4], vec[4:5]
    n2g, n2b = vec[5:6], vec[6:7]
    out_b = vec[7:8]

    # ---- fused backbone 1x1 conv + input_proj (single MXU pass) ----
    src = jnp.einsum('thc,cd->thd', feat, wf_ref[...],
                     preferred_element_type=jnp.float32) + bf[None, :, :]
    kmem = src + pos_ref[...][None, :, :]             # keys: +pos, values: src

    # ---- token-encoder stub: per-frame cross-attention, batched over T ----
    qe = jnp.broadcast_to(qe_ref[...][None], (T, K, D))
    s = jnp.einsum('tkd,thd->tkh', qe, kmem,
                   preferred_element_type=jnp.float32) * (float(D) ** -0.5)
    s = s - jnp.max(s, axis=-1, keepdims=True)
    p = jnp.exp(s)
    p = p / jnp.sum(p, axis=-1, keepdims=True)
    rep = jnp.einsum('tkh,thd->tkd', p, src,
                     preferred_element_type=jnp.float32)       # [T, K, D]

    # ---- temporal head: Conv1d(k=3, pad=1) x2 + ReLU, mean over time ----
    zedge = jnp.zeros((1, K, D), jnp.float32)
    pad_ref[0:1, :, :] = zedge
    pad_ref[T + 1:T + 2, :, :] = zedge

    def conv1d_k3_p1(x, w, bias):
        # channel-last Conv1d over the time axis; w is [3, Din, Dout] tap-major.
        pad_ref[1:T + 1, :, :] = x
        xp = pad_ref[...]                             # [T+2, K, D]
        acc = bias[None, :, :]                        # bias added once
        for tap in range(3):
            acc = acc + jnp.einsum('tkd,do->tko', xp[tap:tap + T], w[tap],
                                   preferred_element_type=jnp.float32)
        return acc

    h = jax.nn.relu(conv1d_k3_p1(rep, c1w_ref[...], c1b))
    h = jax.nn.relu(conv1d_k3_p1(h, c2w_ref[...], c2b))
    h = jnp.mean(h, axis=0)                           # mean over time -> [K, D]

    def layernorm(x, g, b):
        mu = jnp.mean(x, axis=-1, keepdims=True)
        var = jnp.mean((x - mu) ** 2, axis=-1, keepdims=True)
        return (x - mu) * jax.lax.rsqrt(var + 1e-5) * g + b

    h = layernorm(h, n1g, n1b)                        # norm1

    # ---- nn.MultiheadAttention over K tokens, all heads in one einsum ----
    qkv = jnp.dot(h, iw_ref[...], preferred_element_type=jnp.float32) \
        + ib_ref[...]                                 # [K, 3D]
    q = jnp.transpose(qkv[:, 0 * D:1 * D].reshape(K, NHEADS_AGG, DH), (1, 0, 2))
    kk = jnp.transpose(qkv[:, 1 * D:2 * D].reshape(K, NHEADS_AGG, DH), (1, 0, 2))
    vv = jnp.transpose(qkv[:, 2 * D:3 * D].reshape(K, NHEADS_AGG, DH), (1, 0, 2))
    s2 = jnp.einsum('hke,hje->hkj', q, kk,
                    preferred_element_type=jnp.float32) * (float(DH) ** -0.5)
    s2 = s2 - jnp.max(s2, axis=-1, keepdims=True)
    p2 = jnp.exp(s2)
    p2 = p2 / jnp.sum(p2, axis=-1, keepdims=True)
    ctx = jnp.einsum('hkj,hje->hke', p2, vv,
                     preferred_element_type=jnp.float32)       # [H, K, DH]
    ao = jnp.transpose(ctx, (1, 0, 2)).reshape(K, D)
    ao = jnp.dot(ao, ow_ref[...], preferred_element_type=jnp.float32) + out_b

    h = h + ao                                        # residual (dropout p=0)
    h = layernorm(h, n2g, n2b)                        # norm2

    pooled = jnp.mean(h, axis=0, keepdims=True)       # mean over tokens [1, D]
    logits = jnp.dot(pooled, cw_ref[...],
                     preferred_element_type=jnp.float32) + cb_ref[...]
    o_ref[...] = logits                               # [1, LANE] lane-dense


def _const_spec(shape):
    nd = len(shape)
    return pl.BlockSpec(shape, lambda i, _nd=nd: (0,) * _nd)


# ---------------- full forward ----------------
def dfgar_forward(x, p):
    """x: [B, T, 3, H, W] float32 -> activities_scores [B, NUM_CLASS]."""
    b, t, _, h, w = x.shape
    assert t == T
    oh, ow = h // 4, w // 4
    hw = oh * ow

    # --- backbone stub: 4x4 average pool, channel-last ---
    # TODO(synk): external ResNet backbone replaced by this deterministic stub.
    xp = x.reshape(b, t, 3, oh, 4, ow, 4).mean(axis=(4, 6))     # [b,t,3,oh,ow]
    feat = xp.transpose(0, 1, 3, 4, 2).reshape(b, t, hw, 3)     # [b,t,hw,3]

    # --- fuse backbone 1x1 conv with input_proj (no nonlinearity between) ---
    wf = jnp.dot(p['bb_w'], p['proj_w'])                        # [3, D]
    bf = jnp.dot(p['bb_b'], p['proj_w']) + p['proj_b']          # [1, D]

    # pack per-channel bias / LayerNorm vectors into one [8, D] slab
    vec = jnp.concatenate([bf, p['conv1_b'], p['conv2_b'],
                           p['norm1_g'], p['norm1_b'],
                           p['norm2_g'], p['norm2_b'],
                           p['attn_out_b']], axis=0)            # [8, D]

    # lane-pad the classifier so the kernel output store is 128-lane dense
    cls_w = jnp.pad(p['cls_w'], ((0, 0), (0, LANE - NUM_CLASS)))
    cls_b = jnp.pad(p['cls_b'], ((0, 0), (0, LANE - NUM_CLASS)))

    weights = [wf, vec, p['pos'], p['query_embed'],
               p['conv1_w'], p['conv2_w'],
               p['attn_in_w'], p['attn_in_b'], p['attn_out_w'],
               cls_w, cls_b]

    out = pl.pallas_call(
        _dfgar_kernel,
        out_shape=jax.ShapeDtypeStruct((b, 1, LANE), jnp.float32),
        grid=(b,),
        in_specs=[pl.BlockSpec((None, t, hw, 3), lambda i: (i, 0, 0, 0))]
                 + [_const_spec(a.shape) for a in weights],
        out_specs=pl.BlockSpec((None, 1, LANE), lambda i: (i, 0, 0)),
        scratch_shapes=[pltpu.VMEM((T + 2, K, D), jnp.float32)],
        compiler_params=pltpu.CompilerParams(
            dimension_semantics=("parallel",)),
    )(feat, *weights)
    return out.reshape(b, LANE)[:, :NUM_CLASS]


# ---------------- deterministic parameter init ----------------
def init_params(key):
    ks = jax.random.split(key, 16)
    n = lambda k, shape, s: s * jax.random.normal(k, shape, jnp.float32)
    params = {
        # backbone stub 1x1 conv: [3 -> Cb]
        'bb_w': n(ks[0], (3, BACKBONE_CH), 0.2),
        'bb_b': jnp.zeros((1, BACKBONE_CH), jnp.float32),
        # input_proj 1x1 conv: [Cb -> D]
        'proj_w': n(ks[1], (BACKBONE_CH, D), 0.1),
        'proj_b': jnp.zeros((1, D), jnp.float32),
        # fixed sinusoidal positional encoding over 4x4 spatial grid
        'pos': jnp.sin(jnp.arange(16, dtype=jnp.float32)[:, None] * 0.1
                       + jnp.arange(D, dtype=jnp.float32)[None, :] * 0.3),
        # nn.Embedding(num_tokens, hidden_dim)
        'query_embed': n(ks[2], (K, D), 1.0),
        # nn.Conv1d(D, D, 3, padding=1) weights stored tap-major [3, Din, Dout]
        # (PyTorch layout is [Dout, Din, 3]; this is its transpose(2,1,0))
        'conv1_w': n(ks[3], (3, D, D), (2.0 / (3 * D)) ** 0.5),
        'conv1_b': jnp.zeros((1, D), jnp.float32),
        'conv2_w': n(ks[4], (3, D, D), (2.0 / (3 * D)) ** 0.5),
        'conv2_b': jnp.zeros((1, D), jnp.float32),
        # LayerNorms
        'norm1_g': jnp.ones((1, D), jnp.float32),
        'norm1_b': jnp.zeros((1, D), jnp.float32),
        'norm2_g': jnp.ones((1, D), jnp.float32),
        'norm2_b': jnp.zeros((1, D), jnp.float32),
        # nn.MultiheadAttention(D, NHEADS_AGG): store transposed weights
        'attn_in_w': n(ks[5], (D, 3 * D), (1.0 / D) ** 0.5),   # in_proj_weight.T
        'attn_in_b': jnp.zeros((1, 3 * D), jnp.float32),
        'attn_out_w': n(ks[6], (D, D), (2.0 / D) ** 0.5),      # out_proj.weight.T
        'attn_out_b': jnp.zeros((1, D), jnp.float32),
        # classifier nn.Linear(D, num_class), kaiming_normal, zero bias
        'cls_w': n(ks[7], (D, NUM_CLASS), (2.0 / D) ** 0.5),   # weight.T
        'cls_b': jnp.zeros((1, NUM_CLASS), jnp.float32),
    }
    return params


if __name__ == "__main__":
    B, H, W = 2, 16, 16
    x = jax.random.normal(jax.random.PRNGKey(0), (B, NUM_FRAME, 3, H, W),
                          jnp.float32)
    params = init_params(jax.random.PRNGKey(1))

    fwd = jax.jit(dfgar_forward)
    scores = jax.block_until_ready(fwd(x, params))
    assert scores.shape == (B, NUM_CLASS), scores.shape
    assert bool(jnp.all(jnp.isfinite(scores)))
    print("KERNEL_OK")
</pallas_src>

<mosaic_0001>
module attributes {stable_mosaic.version = 11 : i64} {
  func.func @_dfgar_kernel(%arg0: i32, %arg1: memref<1x8x16x3xf32, #tpu.memory_space<vmem>>, %arg2: memref<3x32xf32, #tpu.memory_space<vmem>>, %arg3: memref<8x32xf32, #tpu.memory_space<vmem>>, %arg4: memref<16x32xf32, #tpu.memory_space<vmem>>, %arg5: memref<8x32xf32, #tpu.memory_space<vmem>>, %arg6: memref<3x32x32xf32, #tpu.memory_space<vmem>>, %arg7: memref<3x32x32xf32, #tpu.memory_space<vmem>>, %arg8: memref<32x96xf32, #tpu.memory_space<vmem>>, %arg9: memref<1x96xf32, #tpu.memory_space<vmem>>, %arg10: memref<32x32xf32, #tpu.memory_space<vmem>>, %arg11: memref<32x128xf32, #tpu.memory_space<vmem>>, %arg12: memref<1x128xf32, #tpu.memory_space<vmem>>, %arg13: memref<1x1x128xf32, #tpu.memory_space<vmem>>, %arg14: memref<10x8x32xf32, #tpu.memory_space<vmem>>) attributes {dimension_semantics = [#tpu.dimension_semantics<parallel>], iteration_bounds = array<i64: 2>, scalar_prefetch = 0 : i64, scratch_operands = 1 : i64, tpu.core_type = #tpu.core_type<tc>, window_params = [{transform_indices = @transform_0, window_bounds = array<i64: 1, 8, 16, 3>}, {pipeline_mode = #tpu.pipeline_mode<synchronous>, transform_indices = @transform_1, window_bounds = array<i64: 3, 32>}, {pipeline_mode = #tpu.pipeline_mode<synchronous>, transform_indices = @transform_2, window_bounds = array<i64: 8, 32>}, {pipeline_mode = #tpu.pipeline_mode<synchronous>, transform_indices = @transform_3, window_bounds = array<i64: 16, 32>}, {pipeline_mode = #tpu.pipeline_mode<synchronous>, transform_indices = @transform_4, window_bounds = array<i64: 8, 32>}, {pipeline_mode = #tpu.pipeline_mode<synchronous>, transform_indices = @transform_5, window_bounds = array<i64: 3, 32, 32>}, {pipeline_mode = #tpu.pipeline_mode<synchronous>, transform_indices = @transform_6, window_bounds = array<i64: 3, 32, 32>}, {pipeline_mode = #tpu.pipeline_mode<synchronous>, transform_indices = @transform_7, window_bounds = array<i64: 32, 96>}, {pipeline_mode = #tpu.pipeline_mode<synchronous>, transform_indices = @transform_8, window_bounds = array<i64: 1, 96>}, {pipeline_mode = #tpu.pipeline_mode<synchronous>, transform_indices = @transform_9, window_bounds = array<i64: 32, 32>}, {pipeline_mode = #tpu.pipeline_mode<synchronous>, transform_indices = @transform_10, window_bounds = array<i64: 32, 128>}, {pipeline_mode = #tpu.pipeline_mode<synchronous>, transform_indices = @transform_11, window_bounds = array<i64: 1, 128>}, {transform_indices = @transform_12, window_bounds = array<i64: 1, 1, 128>}]} {
    %c0 = arith.constant 0 : index
    %c0_0 = arith.constant 0 : index
    %c0_1 = arith.constant 0 : index
    %c0_2 = arith.constant 0 : index
    %0 = vector.load %arg1[%c0, %c0_0, %c0_1, %c0_2] : memref<1x8x16x3xf32, #tpu.memory_space<vmem>>, vector<1x8x16x3xf32>
    %1 = vector.shape_cast %0 : vector<1x8x16x3xf32> to vector<8x16x3xf32>
    %c0_3 = arith.constant 0 : index
    %c0_4 = arith.constant 0 : index
    %2 = vector.load %arg3[%c0_3, %c0_4] : memref<8x32xf32, #tpu.memory_space<vmem>>, vector<8x32xf32>
    %3 = vector.extract_strided_slice %2 {offsets = [0, 0], sizes = [1, 32], strides = [1, 1]} : vector<8x32xf32> to vector<1x32xf32>
    %4 = vector.extract_strided_slice %2 {offsets = [1, 0], sizes = [1, 32], strides = [1, 1]} : vector<8x32xf32> to vector<1x32xf32>
    %5 = vector.extract_strided_slice %2 {offsets = [2, 0], sizes = [1, 32], strides = [1, 1]} : vector<8x32xf32> to vector<1x32xf32>
    %6 = vector.extract_strided_slice %2 {offsets = [3, 0], sizes = [1, 32], strides = [1, 1]} : vector<8x32xf32> to vector<1x32xf32>
    %7 = vector.extract_strided_slice %2 {offsets = [4, 0], sizes = [1, 32], strides = [1, 1]} : vector<8x32xf32> to vector<1x32xf32>
    %8 = vector.extract_strided_slice %2 {offsets = [5, 0], sizes = [1, 32], strides = [1, 1]} : vector<8x32xf32> to vector<1x32xf32>
    %9 = vector.extract_strided_slice %2 {offsets = [6, 0], sizes = [1, 32], strides = [1, 1]} : vector<8x32xf32> to vector<1x32xf32>
    %10 = vector.extract_strided_slice %2 {offsets = [7, 0], sizes = [1, 32], strides = [1, 1]} : vector<8x32xf32> to vector<1x32xf32>
    %c0_5 = arith.constant 0 : index
    %c0_6 = arith.constant 0 : index
    %11 = vector.load %arg2[%c0_5, %c0_6] : memref<3x32xf32, #tpu.memory_space<vmem>>, vector<3x32xf32>
    "tpu.trace_start"() <{level = 10 : i32, message = "thc,cd->thd"}> : () -> ()
    %cst = arith.constant dense<0.000000e+00> : vector<8x16x32xf32>
    %12 = tpu.matmul %1, %11, %cst {dimension_numbers = #tpu.dot_dimension_numbers<[2], [0], [0, 1], [1], [0, 0, 0, 1, 1, 1], [], []>} : vector<8x16x3xf32>, vector<3x32xf32>, vector<8x16x32xf32> -> vector<8x16x32xf32>
    "tpu.trace_stop"() : () -> ()
    %13 = vector.shape_cast %3 : vector<1x32xf32> to vector<1x1x32xf32>
    %14 = vector.broadcast %13 : vector<1x1x32xf32> to vector<8x16x32xf32>
    %15 = arith.addf %12, %14 : vector<8x16x32xf32>
    %c0_7 = arith.constant 0 : index
    %c0_8 = arith.constant 0 : index
    %16 = vector.load %arg4[%c0_7, %c0_8] : memref<16x32xf32, #tpu.memory_space<vmem>>, vector<16x32xf32>
    %17 = vector.shape_cast %16 : vector<16x32xf32> to vector<1x16x32xf32>
    %18 = vector.broadcast %17 : vector<1x16x32xf32> to vector<8x16x32xf32>
    %19 = arith.addf %15, %18 : vector<8x16x32xf32>
    %c0_9 = arith.constant 0 : index
    %c0_10 = arith.constant 0 : index
    %20 = vector.load %arg5[%c0_9, %c0_10] : memref<8x32xf32, #tpu.memory_space<vmem>>, vector<8x32xf32>
    %21 = vector.shape_cast %20 : vector<8x32xf32> to vector<1x8x32xf32>
    %22 = vector.shape_cast %21 : vector<1x8x32xf32> to vector<1x8x32xf32>
    %23 = vector.broadcast %22 : vector<1x8x32xf32> to vector<8x8x32xf32>
    "tpu.trace_start"() <{level = 10 : i32, message = "tkd,thd->tkh"}> : () -> ()
    %cst_11 = arith.constant dense<0.000000e+00> : vector<8x8x16xf32>
    %24 = tpu.matmul %23, %19, %cst_11 {dimension_numbers = #tpu.dot_dimension_numbers<[2], [2], [1], [1], [0, 0, 0, 1, 1, 1], [0], [0]>} : vector<8x8x32xf32>, vector<8x16x32xf32>, vector<8x8x16xf32> -> vector<8x8x16xf32>
    "tpu.trace_stop"() : () -> ()
    %cst_12 = arith.constant 0.176776692 : f32
    %25 = vector.broadcast %cst_12 : f32 to vector<8x8x16xf32>
    %26 = arith.mulf %24, %25 : vector<8x8x16xf32>
    %cst_13 = arith.constant dense<0xFF800000> : vector<8x8xf32>
    %27 = vector.multi_reduction <maximumf>, %26, %cst_13 [2] : vector<8x8x16xf32> to vector<8x8xf32>
    %28 = vector.shape_cast %27 : vector<8x8xf32> to vector<8x8x1xf32>
    %29 = vector.broadcast %28 : vector<8x8x1xf32> to vector<8x8x16xf32>
    %30 = arith.subf %26, %29 : vector<8x8x16xf32>
    %31 = math.exp %30 : vector<8x8x16xf32>
    %cst_14 = arith.constant dense<0.000000e+00> : vector<8x8xf32>
    %32 = vector.multi_reduction <add>, %31, %cst_14 [2] : vector<8x8x16xf32> to vector<8x8xf32>
    %33 = vector.shape_cast %32 : vector<8x8xf32> to vector<8x8x1xf32>
    %34 = vector.broadcast %33 : vector<8x8x1xf32> to vector<8x8x16xf32>
    %35 = arith.divf %31, %34 : vector<8x8x16xf32>
    "tpu.trace_start"() <{level = 10 : i32, message = "tkh,thd->tkd"}> : () -> ()
    %cst_15 = arith.constant dense<0.000000e+00> : vector<8x8x32xf32>
    %36 = tpu.matmul %35, %15, %cst_15 {dimension_numbers = #tpu.dot_dimension_numbers<[2], [1], [1], [2], [0, 0, 0, 1, 1, 2], [0], [0]>} : vector<8x8x16xf32>, vector<8x16x32xf32>, vector<8x8x32xf32> -> vector<8x8x32xf32>
    %cst_16 = arith.constant 0.000000e+00 : f32
    "tpu.trace_stop"() : () -> ()
    %37 = vector.broadcast %cst_16 : f32 to vector<1x8x32xf32>
    %c0_17 = arith.constant 0 : index
    %c0_18 = arith.constant 0 : index
    %c0_19 = arith.constant 0 : index
    %38 = vector.load %arg14[%c0_17, %c0_18, %c0_19] : memref<10x8x32xf32, #tpu.memory_space<vmem>>, vector<1x8x32xf32>
    tpu.vector_store %arg14[%c0_17, %c0_18, %c0_19], %37 {strides = array<i32>} : memref<10x8x32xf32, #tpu.memory_space<vmem>>, vector<1x8x32xf32>,
    %c9 = arith.constant 9 : index
    %c0_20 = arith.constant 0 : index
    %c0_21 = arith.constant 0 : index
    %39 = vector.load %arg14[%c9, %c0_20, %c0_21] : memref<10x8x32xf32, #tpu.memory_space<vmem>>, vector<1x8x32xf32>
    tpu.vector_store %arg14[%c9, %c0_20, %c0_21], %37 {strides = array<i32>} : memref<10x8x32xf32, #tpu.memory_space<vmem>>, vector<1x8x32xf32>,
    %c0_22 = arith.constant 0 : index
    %c0_23 = arith.constant 0 : index
    %c0_24 = arith.constant 0 : index
    %40 = vector.load %arg6[%c0_22, %c0_23, %c0_24] : memref<3x32x32xf32, #tpu.memory_space<vmem>>, vector<3x32x32xf32>
    %c1 = arith.constant 1 : index
    %c0_25 = arith.constant 0 : index
    %c0_26 = arith.constant 0 : index
    %41 = vector.load %arg14[%c1, %c0_25, %c0_26] : memref<10x8x32xf32, #tpu.memory_space<vmem>>, vector<8x8x32xf32>
    tpu.vector_store %arg14[%c1, %c0_25, %c0_26], %36 {strides = array<i32>} : memref<10x8x32xf32, #tpu.memory_space<vmem>>, vector<8x8x32xf32>,
    %c0_27 = arith.constant 0 : index
    %c0_28 = arith.constant 0 : index
    %c0_29 = arith.constant 0 : index
    %42 = vector.load %arg14[%c0_27, %c0_28, %c0_29] : memref<10x8x32xf32, #tpu.memory_space<vmem>>, vector<10x8x32xf32>
    %43 = vector.shape_cast %4 : vector<1x32xf32> to vector<1x1x32xf32>
    %44 = vector.extract_strided_slice %42 {offsets = [0, 0, 0], sizes = [8, 8, 32], strides = [1, 1, 1]} : vector<10x8x32xf32> to vector<8x8x32xf32>
    %45 = vector.extract_strided_slice %40 {offsets = [0, 0, 0], sizes = [1, 32, 32], strides = [1, 1, 1]} : vector<3x32x32xf32> to vector<1x32x32xf32>
    %46 = vector.shape_cast %45 : vector<1x32x32xf32> to vector<32x32xf32>
    "tpu.trace_start"() <{level = 10 : i32, message = "tkd,do->tko"}> : () -> ()
    %cst_30 = arith.constant dense<0.000000e+00> : vector<8x8x32xf32>
    %47 = tpu.matmul %44, %46, %cst_30 {dimension_numbers = #tpu.dot_dimension_numbers<[2], [0], [0, 1], [1], [0, 0, 0, 1, 1, 1], [], []>} : vector<8x8x32xf32>, vector<32x32xf32>, vector<8x8x32xf32> -> vector<8x8x32xf32>
    "tpu.trace_stop"() : () -> ()
    %48 = vector.broadcast %43 : vector<1x1x32xf32> to vector<8x8x32xf32>
    %49 = arith.addf %48, %47 : vector<8x8x32xf32>
    %50 = vector.extract_strided_slice %42 {offsets = [1, 0, 0], sizes = [8, 8, 32], strides = [1, 1, 1]} : vector<10x8x32xf32> to vector<8x8x32xf32>
    %51 = vector.extract_strided_slice %40 {offsets = [1, 0, 0], sizes = [1, 32, 32], strides = [1, 1, 1]} : vector<3x32x32xf32> to vector<1x32x32xf32>
    %52 = vector.shape_cast %51 : vector<1x32x32xf32> to vector<32x32xf32>
    "tpu.trace_start"() <{level = 10 : i32, message = "tkd,do->tko"}> : () -> ()
    %cst_31 = arith.constant dense<0.000000e+00> : vector<8x8x32xf32>
    %53 = tpu.matmul %50, %52, %cst_31 {dimension_numbers = #tpu.dot_dimension_numbers<[2], [0], [0, 1], [1], [0, 0, 0, 1, 1, 1], [], []>} : vector<8x8x32xf32>, vector<32x32xf32>, vector<8x8x32xf32> -> vector<8x8x32xf32>
    "tpu.trace_stop"() : () -> ()
    %54 = arith.addf %49, %53 : vector<8x8x32xf32>
    %55 = vector.extract_strided_slice %42 {offsets = [2, 0, 0], sizes = [8, 8, 32], strides = [1, 1, 1]} : vector<10x8x32xf32> to vector<8x8x32xf32>
    %56 = vector.extract_strided_slice %40 {offsets = [2, 0, 0], sizes = [1, 32, 32], strides = [1, 1, 1]} : vector<3x32x32xf32> to vector<1x32x32xf32>
    %57 = vector.shape_cast %56 : vector<1x32x32xf32> to vector<32x32xf32>
    "tpu.trace_start"() <{level = 10 : i32, message = "tkd,do->tko"}> : () -> ()
    %cst_32 = arith.constant dense<0.000000e+00> : vector<8x8x32xf32>
    %58 = tpu.matmul %55, %57, %cst_32 {dimension_numbers = #tpu.dot_dimension_numbers<[2], [0], [0, 1], [1], [0, 0, 0, 1, 1, 1], [], []>} : vector<8x8x32xf32>, vector<32x32xf32>, vector<8x8x32xf32> -> vector<8x8x32xf32>
    "tpu.trace_stop"() : () -> ()
    %59 = arith.addf %54, %58 : vector<8x8x32xf32>
    %cst_33 = arith.constant 0.000000e+00 : f32
    %60 = vector.broadcast %cst_33 : f32 to vector<8x8x32xf32>
    %61 = arith.maximumf %59, %60 : vector<8x8x32xf32>
    %c0_34 = arith.constant 0 : index
    %c0_35 = arith.constant 0 : index
    %c0_36 = arith.constant 0 : index
    %62 = vector.load %arg7[%c0_34, %c0_35, %c0_36] : memref<3x32x32xf32, #tpu.memory_space<vmem>>, vector<3x32x32xf32>
    %c1_37 = arith.constant 1 : index
    %c0_38 = arith.constant 0 : index
    %c0_39 = arith.constant 0 : index
    %63 = vector.load %arg14[%c1_37, %c0_38, %c0_39] : memref<10x8x32xf32, #tpu.memory_space<vmem>>, vector<8x8x32xf32>
    tpu.vector_store %arg14[%c1_37, %c0_38, %c0_39], %61 {strides = array<i32>} : memref<10x8x32xf32, #tpu.memory_space<vmem>>, vector<8x8x32xf32>,
    %c0_40 = arith.constant 0 : index
    %c0_41 = arith.constant 0 : index
    %c0_42 = arith.constant 0 : index
    %64 = vector.load %arg14[%c0_40, %c0_41, %c0_42] : memref<10x8x32xf32, #tpu.memory_space<vmem>>, vector<10x8x32xf32>
    %65 = vector.shape_cast %5 : vector<1x32xf32> to vector<1x1x32xf32>
    %66 = vector.extract_strided_slice %64 {offsets = [0, 0, 0], sizes = [8, 8, 32], strides = [1, 1, 1]} : vector<10x8x32xf32> to vector<8x8x32xf32>
    %67 = vector.extract_strided_slice %62 {offsets = [0, 0, 0], sizes = [1, 32, 32], strides = [1, 1, 1]} : vector<3x32x32xf32> to vector<1x32x32xf32>
    %68 = vector.shape_cast %67 : vector<1x32x32xf32> to vector<32x32xf32>
    "tpu.trace_start"() <{level = 10 : i32, message = "tkd,do->tko"}> : () -> ()
    %cst_43 = arith.constant dense<0.000000e+00> : vector<8x8x32xf32>
    %69 = tpu.matmul %66, %68, %cst_43 {dimension_numbers = #tpu.dot_dimension_numbers<[2], [0], [0, 1], [1], [0, 0, 0, 1, 1, 1], [], []>} : vector<8x8x32xf32>, vector<32x32xf32>, vector<8x8x32xf32> -> vector<8x8x32xf32>
    "tpu.trace_stop"() : () -> ()
    %70 = vector.broadcast %65 : vector<1x1x32xf32> to vector<8x8x32xf32>
    %71 = arith.addf %70, %69 : vector<8x8x32xf32>
    %72 = vector.extract_strided_slice %64 {offsets = [1, 0, 0], sizes = [8, 8, 32], strides = [1, 1, 1]} : vector<10x8x32xf32> to vector<8x8x32xf32>
    %73 = vector.extract_strided_slice %62 {offsets = [1, 0, 0], sizes = [1, 32, 32], strides = [1, 1, 1]} : vector<3x32x32xf32> to vector<1x32x32xf32>
    %74 = vector.shape_cast %73 : vector<1x32x32xf32> to vector<32x32xf32>
    "tpu.trace_start"() <{level = 10 : i32, message = "tkd,do->tko"}> : () -> ()
    %cst_44 = arith.constant dense<0.000000e+00> : vector<8x8x32xf32>
    %75 = tpu.matmul %72, %74, %cst_44 {dimension_numbers = #tpu.dot_dimension_numbers<[2], [0], [0, 1], [1], [0, 0, 0, 1, 1, 1], [], []>} : vector<8x8x32xf32>, vector<32x32xf32>, vector<8x8x32xf32> -> vector<8x8x32xf32>
    "tpu.trace_stop"() : () -> ()
    %76 = arith.addf %71, %75 : vector<8x8x32xf32>
    %77 = vector.extract_strided_slice %64 {offsets = [2, 0, 0], sizes = [8, 8, 32], strides = [1, 1, 1]} : vector<10x8x32xf32> to vector<8x8x32xf32>
    %78 = vector.extract_strided_slice %62 {offsets = [2, 0, 0], sizes = [1, 32, 32], strides = [1, 1, 1]} : vector<3x32x32xf32> to vector<1x32x32xf32>
    %79 = vector.shape_cast %78 : vector<1x32x32xf32> to vector<32x32xf32>
    "tpu.trace_start"() <{level = 10 : i32, message = "tkd,do->tko"}> : () -> ()
    %cst_45 = arith.constant dense<0.000000e+00> : vector<8x8x32xf32>
    %80 = tpu.matmul %77, %79, %cst_45 {dimension_numbers = #tpu.dot_dimension_numbers<[2], [0], [0, 1], [1], [0, 0, 0, 1, 1, 1], [], []>} : vector<8x8x32xf32>, vector<32x32xf32>, vector<8x8x32xf32> -> vector<8x8x32xf32>
    "tpu.trace_stop"() : () -> ()
    %81 = arith.addf %76, %80 : vector<8x8x32xf32>
    %cst_46 = arith.constant 0.000000e+00 : f32
    %82 = vector.broadcast %cst_46 : f32 to vector<8x8x32xf32>
    %83 = arith.maximumf %81, %82 : vector<8x8x32xf32>
    %cst_47 = arith.constant dense<0.000000e+00> : vector<8x32xf32>
    %84 = vector.multi_reduction <add>, %83, %cst_47 [0] : vector<8x8x32xf32> to vector<8x32xf32>
    %cst_48 = arith.constant 8.000000e+00 : f32
    %85 = vector.broadcast %cst_48 : f32 to vector<8x32xf32>
    %86 = arith.divf %84, %85 : vector<8x32xf32>
    %cst_49 = arith.constant dense<0.000000e+00> : vector<8xf32>
    %87 = vector.multi_reduction <add>, %86, %cst_49 [1] : vector<8x32xf32> to vector<8xf32>
    %88 = vector.shape_cast %87 : vector<8xf32> to vector<8x1xf32>
    %cst_50 = arith.constant 3.200000e+01 : f32
    %89 = vector.broadcast %cst_50 : f32 to vector<8x1xf32>
    %90 = arith.divf %88, %89 : vector<8x1xf32>
    %91 = vector.broadcast %90 : vector<8x1xf32> to vector<8x32xf32>
    %92 = arith.subf %86, %91 : vector<8x32xf32>
    %93 = arith.mulf %92, %92 : vector<8x32xf32>
    %cst_51 = arith.constant dense<0.000000e+00> : vector<8xf32>
    %94 = vector.multi_reduction <add>, %93, %cst_51 [1] : vector<8x32xf32> to vector<8xf32>
    %95 = vector.shape_cast %94 : vector<8xf32> to vector<8x1xf32>
    %cst_52 = arith.constant 3.200000e+01 : f32
    %96 = vector.broadcast %cst_52 : f32 to vector<8x1xf32>
    %97 = arith.divf %95, %96 : vector<8x1xf32>
    %98 = vector.broadcast %90 : vector<8x1xf32> to vector<8x32xf32>
    %99 = arith.subf %86, %98 : vector<8x32xf32>
    %cst_53 = arith.constant 9.99999974E-6 : f32
    %100 = vector.broadcast %cst_53 : f32 to vector<8x1xf32>
    %101 = arith.addf %97, %100 : vector<8x1xf32>
    %102 = math.rsqrt %101 : vector<8x1xf32>
    %103 = vector.broadcast %102 : vector<8x1xf32> to vector<8x32xf32>
    %104 = arith.mulf %99, %103 : vector<8x32xf32>
    %105 = vector.broadcast %6 : vector<1x32xf32> to vector<8x32xf32>
    %106 = arith.mulf %104, %105 : vector<8x32xf32>
    %107 = vector.broadcast %7 : vector<1x32xf32> to vector<8x32xf32>
    %108 = arith.addf %106, %107 : vector<8x32xf32>
    %c0_54 = arith.constant 0 : index
    %c0_55 = arith.constant 0 : index
    %109 = vector.load %arg8[%c0_54, %c0_55] : memref<32x96xf32, #tpu.memory_space<vmem>>, vector<32x96xf32>
    %cst_56 = arith.constant dense<0.000000e+00> : vector<8x96xf32>
    %110 = tpu.matmul %108, %109, %cst_56 {dimension_numbers = #tpu.dot_dimension_numbers<[1], [0], [0], [1], [0, 0, 1, 1], [], []>} : vector<8x32xf32>, vector<32x96xf32>, vector<8x96xf32> -> vector<8x96xf32>
    %c0_57 = arith.constant 0 : index
    %c0_58 = arith.constant 0 : index
    %111 = vector.load %arg9[%c0_57, %c0_58] : memref<1x96xf32, #tpu.memory_space<vmem>>, vector<1x96xf32>
    %112 = vector.broadcast %111 : vector<1x96xf32> to vector<8x96xf32>
    %113 = arith.addf %110, %112 : vector<8x96xf32>
    %114 = vector.extract_strided_slice %113 {offsets = [0, 0], sizes = [8, 32], strides = [1, 1]} : vector<8x96xf32> to vector<8x32xf32>
    %115 = vector.shape_cast %114 : vector<8x32xf32> to vector<8x4x8xf32>
    %116 = tpu.transpose %115, [1, 0, 2] : vector<8x4x8xf32> -> vector<4x8x8xf32>
    %117 = vector.extract_strided_slice %113 {offsets = [0, 32], sizes = [8, 32], strides = [1, 1]} : vector<8x96xf32> to vector<8x32xf32>
    %118 = vector.shape_cast %117 : vector<8x32xf32> to vector<8x4x8xf32>
    %119 = tpu.transpose %118, [1, 0, 2] : vector<8x4x8xf32> -> vector<4x8x8xf32>
    %120 = vector.extract_strided_slice %113 {offsets = [0, 64], sizes = [8, 32], strides = [1, 1]} : vector<8x96xf32> to vector<8x32xf32>
    %121 = vector.shape_cast %120 : vector<8x32xf32> to vector<8x4x8xf32>
    %122 = tpu.transpose %121, [1, 0, 2] : vector<8x4x8xf32> -> vector<4x8x8xf32>
    "tpu.trace_start"() <{level = 10 : i32, message = "hke,hje->hkj"}> : () -> ()
    %cst_59 = arith.constant dense<0.000000e+00> : vector<4x8x8xf32>
    %123 = tpu.matmul %116, %119, %cst_59 {dimension_numbers = #tpu.dot_dimension_numbers<[2], [2], [1], [1], [0, 0, 0, 1, 1, 1], [0], [0]>} : vector<4x8x8xf32>, vector<4x8x8xf32>, vector<4x8x8xf32> -> vector<4x8x8xf32>
    "tpu.trace_stop"() : () -> ()
    %cst_60 = arith.constant 0.353553385 : f32
    %124 = vector.broadcast %cst_60 : f32 to vector<4x8x8xf32>
    %125 = arith.mulf %123, %124 : vector<4x8x8xf32>
    %cst_61 = arith.constant dense<0xFF800000> : vector<4x8xf32>
    %126 = vector.multi_reduction <maximumf>, %125, %cst_61 [2] : vector<4x8x8xf32> to vector<4x8xf32>
    %127 = vector.shape_cast %126 : vector<4x8xf32> to vector<4x8x1xf32>
    %128 = vector.broadcast %127 : vector<4x8x1xf32> to vector<4x8x8xf32>
    %129 = arith.subf %125, %128 : vector<4x8x8xf32>
    %130 = math.exp %129 : vector<4x8x8xf32>
    %cst_62 = arith.constant dense<0.000000e+00> : vector<4x8xf32>
    %131 = vector.multi_reduction <add>, %130, %cst_62 [2] : vector<4x8x8xf32> to vector<4x8xf32>
    %132 = vector.shape_cast %131 : vector<4x8xf32> to vector<4x8x1xf32>
    %133 = vector.broadcast %132 : vector<4x8x1xf32> to vector<4x8x8xf32>
    %134 = arith.divf %130, %133 : vector<4x8x8xf32>
    "tpu.trace_start"() <{level = 10 : i32, message = "hkj,hje->hke"}> : () -> ()
    %cst_63 = arith.constant dense<0.000000e+00> : vector<4x8x8xf32>
    %135 = tpu.matmul %134, %122, %cst_63 {dimension_numbers = #tpu.dot_dimension_numbers<[2], [1], [1], [2], [0, 0, 0, 1, 1, 2], [0], [0]>} : vector<4x8x8xf32>, vector<4x8x8xf32>, vector<4x8x8xf32> -> vector<4x8x8xf32>
    "tpu.trace_stop"() : () -> ()
    %136 = tpu.transpose %135, [1, 0, 2] : vector<4x8x8xf32> -> vector<8x4x8xf32>
    %137 = vector.shape_cast %136 : vector<8x4x8xf32> to vector<8x32xf32>
    %c0_64 = arith.constant 0 : index
    %c0_65 = arith.constant 0 : index
    %138 = vector.load %arg10[%c0_64, %c0_65] : memref<32x32xf32, #tpu.memory_space<vmem>>, vector<32x32xf32>
    %cst_66 = arith.constant dense<0.000000e+00> : vector<8x32xf32>
    %139 = tpu.matmul %137, %138, %cst_66 {dimension_numbers = #tpu.dot_dimension_numbers<[1], [0], [0], [1], [0, 0, 1, 1], [], []>} : vector<8x32xf32>, vector<32x32xf32>, vector<8x32xf32> -> vector<8x32xf32>
    %140 = vector.broadcast %10 : vector<1x32xf32> to vector<8x32xf32>
    %141 = arith.addf %139, %140 : vector<8x32xf32>
    %142 = arith.addf %108, %141 : vector<8x32xf32>
    %cst_67 = arith.constant dense<0.000000e+00> : vector<8xf32>
    %143 = vector.multi_reduction <add>, %142, %cst_67 [1] : vector<8x32xf32> to vector<8xf32>
    %144 = vector.shape_cast %143 : vector<8xf32> to vector<8x1xf32>
    %cst_68 = arith.constant 3.200000e+01 : f32
    %145 = vector.broadcast %cst_68 : f32 to vector<8x1xf32>
    %146 = arith.divf %144, %145 : vector<8x1xf32>
    %147 = vector.broadcast %146 : vector<8x1xf32> to vector<8x32xf32>
    %148 = arith.subf %142, %147 : vector<8x32xf32>
    %149 = arith.mulf %148, %148 : vector<8x32xf32>
    %cst_69 = arith.constant dense<0.000000e+00> : vector<8xf32>
    %150 = vector.multi_reduction <add>, %149, %cst_69 [1] : vector<8x32xf32> to vector<8xf32>
    %151 = vector.shape_cast %150 : vector<8xf32> to vector<8x1xf32>
    %cst_70 = arith.constant 3.200000e+01 : f32
    %152 = vector.broadcast %cst_70 : f32 to vector<8x1xf32>
    %153 = arith.divf %151, %152 : vector<8x1xf32>
    %154 = vector.broadcast %146 : vector<8x1xf32> to vector<8x32xf32>
    %155 = arith.subf %142, %154 : vector<8x32xf32>
    %cst_71 = arith.constant 9.99999974E-6 : f32
    %156 = vector.broadcast %cst_71 : f32 to vector<8x1xf32>
    %157 = arith.addf %153, %156 : vector<8x1xf32>
    %158 = math.rsqrt %157 : vector<8x1xf32>
    %159 = vector.broadcast %158 : vector<8x1xf32> to vector<8x32xf32>
    %160 = arith.mulf %155, %159 : vector<8x32xf32>
    %161 = vector.broadcast %8 : vector<1x32xf32> to vector<8x32xf32>
    %162 = arith.mulf %160, %161 : vector<8x32xf32>
    %163 = vector.broadcast %9 : vector<1x32xf32> to vector<8x32xf32>
    %164 = arith.addf %162, %163 : vector<8x32xf32>
    %cst_72 = arith.constant dense<0.000000e+00> : vector<32xf32>
    %165 = vector.multi_reduction <add>, %164, %cst_72 [0] : vector<8x32xf32> to vector<32xf32>
    %166 = vector.shape_cast %165 : vector<32xf32> to vector<1x32xf32>
    %cst_73 = arith.constant 8.000000e+00 : f32
    %167 = vector.broadcast %cst_73 : f32 to vector<1x32xf32>
    %168 = arith.divf %166, %167 : vector<1x32xf32>
    %c0_74 = arith.constant 0 : index
    %c0_75 = arith.constant 0 : index
    %169 = vector.load %arg11[%c0_74, %c0_75] : memref<32x128xf32, #tpu.memory_space<vmem>>, vector<32x128xf32>
    %cst_76 = arith.constant dense<0.000000e+00> : vector<1x128xf32>
    %170 = tpu.matmul %168, %169, %cst_76 {dimension_numbers = #tpu.dot_dimension_numbers<[1], [0], [0], [1], [0, 0, 1, 1], [], []>} : vector<1x32xf32>, vector<32x128xf32>, vector<1x128xf32> -> vector<1x128xf32>
    %c0_77 = arith.constant 0 : index
    %c0_78 = arith.constant 0 : index
    %171 = vector.load %arg12[%c0_77, %c0_78] : memref<1x128xf32, #tpu.memory_space<vmem>>, vector<1x128xf32>
    %172 = arith.addf %170, %171 : vector<1x128xf32>
    %c0_79 = arith.constant 0 : index
    %c0_80 = arith.constant 0 : index
    %c0_81 = arith.constant 0 : index
    %173 = vector.load %arg13[%c0_79, %c0_80, %c0_81] : memref<1x1x128xf32, #tpu.memory_space<vmem>>, vector<1x1x128xf32>
    %174 = vector.shape_cast %173 : vector<1x1x128xf32> to vector<1x128xf32>
    %175 = vector.shape_cast %172 : vector<1x128xf32> to vector<1x1x128xf32>
    tpu.vector_store %arg13[%c0_79, %c0_80, %c0_81], %175 {strides = array<i32>} : memref<1x1x128xf32, #tpu.memory_space<vmem>>, vector<1x1x128xf32>,
    return
  }
  func.func @transform_0(%arg0: i32) -> (i32, i32, i32, i32) {
    %c0_i32 = arith.constant 0 : i32
    %c0_i32_0 = arith.constant 0 : i32
    %c0_i32_1 = arith.constant 0 : i32
    %c0_i32_2 = arith.constant 0 : i32
    return %arg0, %c0_i32, %c0_i32_0, %c0_i32_1 : i32, i32, i32, i32
  }
  func.func @transform_1(%arg0: i32) -> (i32, i32) {
    %c0_i32 = arith.constant 0 : i32
    %c0_i32_0 = arith.constant 0 : i32
    %c0_i32_1 = arith.constant 0 : i32
    return %c0_i32, %c0_i32_0 : i32, i32
  }
  func.func @transform_2(%arg0: i32) -> (i32, i32) {
    %c0_i32 = arith.constant 0 : i32
    %c0_i32_0 = arith.constant 0 : i32
    %c0_i32_1 = arith.constant 0 : i32
    return %c0_i32, %c0_i32_0 : i32, i32
  }
  func.func @transform_3(%arg0: i32) -> (i32, i32) {
    %c0_i32 = arith.constant 0 : i32
    %c0_i32_0 = arith.constant 0 : i32
    %c0_i32_1 = arith.constant 0 : i32
    return %c0_i32, %c0_i32_0 : i32, i32
  }
  func.func @transform_4(%arg0: i32) -> (i32, i32) {
    %c0_i32 = arith.constant 0 : i32
    %c0_i32_0 = arith.constant 0 : i32
    %c0_i32_1 = arith.constant 0 : i32
    return %c0_i32, %c0_i32_0 : i32, i32
  }
  func.func @transform_5(%arg0: i32) -> (i32, i32, i32) {
    %c0_i32 = arith.constant 0 : i32
    %c0_i32_0 = arith.constant 0 : i32
    %c0_i32_1 = arith.constant 0 : i32
    %c0_i32_2 = arith.constant 0 : i32
    return %c0_i32, %c0_i32_0, %c0_i32_1 : i32, i32, i32
  }
  func.func @transform_6(%arg0: i32) -> (i32, i32, i32) {
    %c0_i32 = arith.constant 0 : i32
    %c0_i32_0 = arith.constant 0 : i32
    %c0_i32_1 = arith.constant 0 : i32
    %c0_i32_2 = arith.constant 0 : i32
    return %c0_i32, %c0_i32_0, %c0_i32_1 : i32, i32, i32
  }
  func.func @transform_7(%arg0: i32) -> (i32, i32) {
    %c0_i32 = arith.constant 0 : i32
    %c0_i32_0 = arith.constant 0 : i32
    %c0_i32_1 = arith.constant 0 : i32
    return %c0_i32, %c0_i32_0 : i32, i32
  }
  func.func @transform_8(%arg0: i32) -> (i32, i32) {
    %c0_i32 = arith.constant 0 : i32
    %c0_i32_0 = arith.constant 0 : i32
    %c0_i32_1 = arith.constant 0 : i32
    return %c0_i32, %c0_i32_0 : i32, i32
  }
  func.func @transform_9(%arg0: i32) -> (i32, i32) {
    %c0_i32 = arith.constant 0 : i32
    %c0_i32_0 = arith.constant 0 : i32
    %c0_i32_1 = arith.constant 0 : i32
    return %c0_i32, %c0_i32_0 : i32, i32
  }
  func.func @transform_10(%arg0: i32) -> (i32, i32) {
    %c0_i32 = arith.constant 0 : i32
    %c0_i32_0 = arith.constant 0 : i32
    %c0_i32_1 = arith.constant 0 : i32
    return %c0_i32, %c0_i32_0 : i32, i32
  }
  func.func @transform_11(%arg0: i32) -> (i32, i32) {
    %c0_i32 = arith.constant 0 : i32
    %c0_i32_0 = arith.constant 0 : i32
    %c0_i32_1 = arith.constant 0 : i32
    return %c0_i32, %c0_i32_0 : i32, i32
  }
  func.func @transform_12(%arg0: i32) -> (i32, i32, i32) {
    %c0_i32 = arith.constant 0 : i32
    %c0_i32_0 = arith.constant 0 : i32
    %c0_i32_1 = arith.constant 0 : i32
    return %arg0, %c0_i32, %c0_i32_0 : i32, i32, i32
  }
}

</mosaic_0001>

<llo_original>
// kernel: dfgar_forward.1
$region0: #{dfgar_forward.1}
  #allocation0 [shape = 'u32[]', space=smem, size = 0x4, offset = 0x4, fixed_abs, tag = 'smem constant byte address 0x4 - core index']
  #allocation1 [shape = 'u32[72,128]{1,0:T(1,128)}', space=vmem, size = 0x9000, scoped, tag = 'internal scratch']
  #allocation2 [shape = 'f32[10,8,32]{2,1,0:T(8,128)}', space=vmem, size = 0xa000, scoped, tag = 'scratch operand']
  %s0 = inlined_call_operand.vmem [shape: f32[2,8,16,3], index: 0, kind: input, shape index: {}]
  %s1 = inlined_call_operand.vmem [shape: f32[3,32], index: 1, kind: input, shape index: {}]
  %s2 = inlined_call_operand.vmem [shape: f32[8,32], index: 2, kind: input, shape index: {}]
  %s3 = inlined_call_operand.vmem [shape: f32[16,32], index: 3, kind: input, shape index: {}]
  %s4 = inlined_call_operand.vmem [shape: f32[8,32], index: 4, kind: input, shape index: {}]
  %s5 = inlined_call_operand.vmem [shape: f32[3,32,32], index: 5, kind: input, shape index: {}]
  %s6 = inlined_call_operand.vmem [shape: f32[3,32,32], index: 6, kind: input, shape index: {}]
  %s7 = inlined_call_operand.vmem [shape: f32[32,96], index: 7, kind: input, shape index: {}]
  %s8 = inlined_call_operand.vmem [shape: f32[1,96], index: 8, kind: input, shape index: {}]
  %s9 = inlined_call_operand.vmem [shape: f32[32,32], index: 9, kind: input, shape index: {}]
  %s10 = inlined_call_operand.vmem [shape: f32[32,128], index: 10, kind: input, shape index: {}]
  %s11 = inlined_call_operand.vmem [shape: f32[1,128], index: 11, kind: input, shape index: {}]
  %s12 = inlined_call_operand.hbm [shape: f32[2,1,128], index: 12, kind: output, shape index: {}]
  %s13 = sld [smem:[#allocation0]]
  $region81: #{dfgar_forward.1} parent=0
    _
  %s15 = ssub.s32 1, %s13
  %s16 = scalar_select 0, %s15, %s13
  $region1: #{dfgar_forward.1} parent=0
    #allocation3 [shape = 'u8[1024]{0}', space=vmem, size = 0x400, scoped, tag = 'output window, operand 0']
    #allocation4 [shape = 's32[2]{0}', space=sflag, size = 0x8, scoped, tag = 'scoped memory for dfgar_forward.1']
    %17 = vsyncpa [#allocation4], 0
    %s18 = scalar_lea.sflag [#allocation4], 1
    %19 = vsyncpa %s18, 0
    loop: start=0, step=1, limit=4
    $region2: #{dfgar_forward.1} parent=1 // loop_pre_header
      _
    $region3: #{dfgar_forward.1} parent=1 // loop_header
      %s21 = sphi 0, %s25
      %p22 = scmp.ge.s32.totalorder %s21, 4
      %s31 = sphi 0, %s33
      %s34 = sphi 0, %s31
      %s35 = sphi 0, %s34
      %s51 = sphi 0, %s35
      %s55 = sphi 0, %s55
      %s57 = sphi 0, %s55
      %s58 = sphi 0, %s57
      %s72 = sphi 0, %s58
      %s76 = sphi 0, %s76
      %s78 = sphi 0, %s76
      %s79 = sphi 0, %s78
      %s93 = sphi 0, %s79
      %s97 = sphi 0, %s97
      %s99 = sphi 0, %s97
      %s100 = sphi 0, %s99
      %s114 = sphi 0, %s100
      %s118 = sphi 0, %s118
      %s120 = sphi 0, %s118
      %s121 = sphi 0, %s120
      %s135 = sphi 0, %s121
      %s139 = sphi 0, %s139
      %s141 = sphi 0, %s139
      %s142 = sphi 0, %s141
      %s156 = sphi 0, %s142
      %s160 = sphi 0, %s160
      %s162 = sphi 0, %s160
      %s163 = sphi 0, %s162
      %s177 = sphi 0, %s163
      %s181 = sphi 0, %s181
      %s183 = sphi 0, %s181
      %s184 = sphi 0, %s183
      %s198 = sphi 0, %s184
      %s202 = sphi 0, %s202
      %s204 = sphi 0, %s202
      %s205 = sphi 0, %s204
      %s219 = sphi 0, %s205
      %s223 = sphi 0, %s223
      %s225 = sphi 0, %s223
      %s226 = sphi 0, %s225
      %s240 = sphi 0, %s226
      %s244 = sphi 0, %s244
      %s246 = sphi 0, %s244
      %s247 = sphi 0, %s246
      %s261 = sphi 0, %s247
      %s265 = sphi 0, %s265
      %s267 = sphi 0, %s265
      %s268 = sphi 0, %s267
      %s282 = sphi 0, %s268
      %s288 = sphi 0, %s290
      %s291 = sphi 0, %s288
      %s292 = sphi 0, %s291
      %s308 = sphi 0, %s292
    $region4: #{dfgar_forward.1} parent=1 // loop_header_branch
      %24 = sbr.rel (%p22) target = $region8
    $region5: #{dfgar_forward.1} parent=1 // loop_body
      %s26 = ssub.s32 %s21, 1
      %s27 = ssub.s32 %s21, 2
      %s28 = sadd.s32 %s21, 1
      %s29 = ssub.s32 %s21, %s28
      %p30 = scmp.eq.s32.totalorder %s29, 0
      %s32 = sadd.s32 %s31, 1
      %s33 = scalar_select %p30, %s31, %s32
      %p36 = pneg %p30
      %p37 = scmp.eq.s32.totalorder %s21, 1
      %p38 = por %p36, %p37
      %p39 = scmp.ne.s32.totalorder %s31, %s34
      %p40 = scmp.eq.s32.totalorder %s21, 0
      %p41 = por %p39, %p40
      %p42 = scmp.ne.s32.totalorder %s31, %s34
      %p43 = scmp.eq.s32.totalorder %s26, 1
      %p44 = por %p42, %p43
      %p45 = scmp.ne.s32.totalorder %s34, %s35
      %p46 = scmp.eq.s32.totalorder %s26, 0
      %p47 = por %p45, %p46
      %p48 = scmp.ne.s32.totalorder %s34, %s35
      %p49 = scmp.eq.s32.totalorder %s27, 1
      %p50 = por %p48, %p49
      %p52 = scmp.ne.s32.totalorder %s35, %s51
      %p53 = scmp.eq.s32.totalorder %s27, 0
      %p54 = por %p52, %p53
      %s56 = sadd.s32 %s55, 1
      %p59 = scmp.eq.s32.totalorder %s21, 1
      %p60 = scmp.ne.s32.totalorder %s55, %s57
      %p61 = scmp.eq.s32.totalorder %s21, 0
      %p62 = por %p60, %p61
      %p63 = scmp.ne.s32.totalorder %s55, %s57
      %p64 = scmp.eq.s32.totalorder %s26, 1
      %p65 = por %p63, %p64
      %p66 = scmp.ne.s32.totalorder %s57, %s58
      %p67 = scmp.eq.s32.totalorder %s26, 0
      %p68 = por %p66, %p67
      %p69 = scmp.ne.s32.totalorder %s57, %s58
      %p70 = scmp.eq.s32.totalorder %s27, 1
      %p71 = por %p69, %p70
      %p73 = scmp.ne.s32.totalorder %s58, %s72
      %p74 = scmp.eq.s32.totalorder %s27, 0
      %p75 = por %p73, %p74
      %s77 = sadd.s32 %s76, 1
      %p80 = scmp.eq.s32.totalorder %s21, 1
      %p81 = scmp.ne.s32.totalorder %s76, %s78
      %p82 = scmp.eq.s32.totalorder %s21, 0
      %p83 = por %p81, %p82
      %p84 = scmp.ne.s32.totalorder %s76, %s78
      %p85 = scmp.eq.s32.totalorder %s26, 1
      %p86 = por %p84, %p85
      %p87 = scmp.ne.s32.totalorder %s78, %s79
      %p88 = scmp.eq.s32.totalorder %s26, 0
      %p89 = por %p87, %p88
      %p90 = scmp.ne.s32.totalorder %s78, %s79
      %p91 = scmp.eq.s32.totalorder %s27, 1
      %p92 = por %p90, %p91
      %p94 = scmp.ne.s32.totalorder %s79, %s93
      %p95 = scmp.eq.s32.totalorder %s27, 0
      %p96 = por %p94, %p95
      %s98 = sadd.s32 %s97, 1
      %p101 = scmp.eq.s32.totalorder %s21, 1
      %p102 = scmp.ne.s32.totalorder %s97, %s99
      %p103 = scmp.eq.s32.totalorder %s21, 0
      %p104 = por %p102, %p103
      %p105 = scmp.ne.s32.totalorder %s97, %s99
      %p106 = scmp.eq.s32.totalorder %s26, 1
      %p107 = por %p105, %p106
      %p108 = scmp.ne.s32.totalorder %s99, %s100
      %p109 = scmp.eq.s32.totalorder %s26, 0
      %p110 = por %p108, %p109
      %p111 = scmp.ne.s32.totalorder %s99, %s100
      %p112 = scmp.eq.s32.totalorder %s27, 1
      %p113 = por %p111, %p112
      %p115 = scmp.ne.s32.totalorder %s100, %s114
      %p116 = scmp.eq.s32.totalorder %s27, 0
      %p117 = por %p115, %p116
      %s119 = sadd.s32 %s118, 1
      %p122 = scmp.eq.s32.totalorder %s21, 1
      %p123 = scmp.ne.s32.totalorder %s118, %s120
      %p124 = scmp.eq.s32.totalorder %s21, 0
      %p125 = por %p123, %p124
      %p126 = scmp.ne.s32.totalorder %s118, %s120
      %p127 = scmp.eq.s32.totalorder %s26, 1
      %p128 = por %p126, %p127
      %p129 = scmp.ne.s32.totalorder %s120, %s121
      %p130 = scmp.eq.s32.totalorder %s26, 0
      %p131 = por %p129, %p130
      %p132 = scmp.ne.s32.totalorder %s120, %s121
      %p133 = scmp.eq.s32.totalorder %s27, 1
      %p134 = por %p132, %p133
      %p136 = scmp.ne.s32.totalorder %s121, %s135
      %p137 = scmp.eq.s32.totalorder %s27, 0
      %p138 = por %p136, %p137
      %s140 = sadd.s32 %s139, 1
      %p143 = scmp.eq.s32.totalorder %s21, 1
      %p144 = scmp.ne.s32.totalorder %s139, %s141
      %p145 = scmp.eq.s32.totalorder %s21, 0
      %p146 = por %p144, %p145
      %p147 = scmp.ne.s32.totalorder %s139, %s141
      %p148 = scmp.eq.s32.totalorder %s26, 1
      %p149 = por %p147, %p148
      %p150 = scmp.ne.s32.totalorder %s141, %s142
      %p151 = scmp.eq.s32.totalorder %s26, 0
      %p152 = por %p150, %p151
      %p153 = scmp.ne.s32.totalorder %s141, %s142
      %p154 = scmp.eq.s32.totalorder %s27, 1
      %p155 = por %p153, %p154
      %p157 = scmp.ne.s32.totalorder %s142, %s156
      %p158 = scmp.eq.s32.totalorder %s27, 0
      %p159 = por %p157, %p158
      %s161 = sadd.s32 %s160, 1
      %p164 = scmp.eq.s32.totalorder %s21, 1
      %p165 = scmp.ne.s32.totalorder %s160, %s162
      %p166 = scmp.eq.s32.totalorder %s21, 0
      %p167 = por %p165, %p166
      %p168 = scmp.ne.s32.totalorder %s160, %s162
      %p169 = scmp.eq.s32.totalorder %s26, 1
      %p170 = por %p168, %p169
      %p171 = scmp.ne.s32.totalorder %s162, %s163
      %p172 = scmp.eq.s32.totalorder %s26, 0
      %p173 = por %p171, %p172
      %p174 = scmp.ne.s32.totalorder %s162, %s163
      %p175 = scmp.eq.s32.totalorder %s27, 1
      %p176 = por %p174, %p175
      %p178 = scmp.ne.s32.totalorder %s163, %s177
      %p179 = scmp.eq.s32.totalorder %s27, 0
      %p180 = por %p178, %p179
      %s182 = sadd.s32 %s181, 1
      %p185 = scmp.eq.s32.totalorder %s21, 1
      %p186 = scmp.ne.s32.totalorder %s181, %s183
      %p187 = scmp.eq.s32.totalorder %s21, 0
      %p188 = por %p186, %p187
      %p189 = scmp.ne.s32.totalorder %s181, %s183
      %p190 = scmp.eq.s32.totalorder %s26, 1
      %p191 = por %p189, %p190
      %p192 = scmp.ne.s32.totalorder %s183, %s184
      %p193 = scmp.eq.s32.totalorder %s26, 0
      %p194 = por %p192, %p193
      %p195 = scmp.ne.s32.totalorder %s183, %s184
      %p196 = scmp.eq.s32.totalorder %s27, 1
      %p197 = por %p195, %p196
      %p199 = scmp.ne.s32.totalorder %s184, %s198
      %p200 = scmp.eq.s32.totalorder %s27, 0
      %p201 = por %p199, %p200
      %s203 = sadd.s32 %s202, 1
      %p206 = scmp.eq.s32.totalorder %s21, 1
      %p207 = scmp.ne.s32.totalorder %s202, %s204
      %p208 = scmp.eq.s32.totalorder %s21, 0
      %p209 = por %p207, %p208
      %p210 = scmp.ne.s32.totalorder %s202, %s204
      %p211 = scmp.eq.s32.totalorder %s26, 1
      %p212 = por %p210, %p211
      %p213 = scmp.ne.s32.totalorder %s204, %s205
      %p214 = scmp.eq.s32.totalorder %s26, 0
      %p215 = por %p213, %p214
      %p216 = scmp.ne.s32.totalorder %s204, %s205
      %p217 = scmp.eq.s32.totalorder %s27, 1
      %p218 = por %p216, %p217
      %p220 = scmp.ne.s32.totalorder %s205, %s219
      %p221 = scmp.eq.s32.totalorder %s27, 0
      %p222 = por %p220, %p221
      %s224 = sadd.s32 %s223, 1
      %p227 = scmp.eq.s32.totalorder %s21, 1
      %p228 = scmp.ne.s32.totalorder %s223, %s225
      %p229 = scmp.eq.s32.totalorder %s21, 0
      %p230 = por %p228, %p229
      %p231 = scmp.ne.s32.totalorder %s223, %s225
      %p232 = scmp.eq.s32.totalorder %s26, 1
      %p233 = por %p231, %p232
      %p234 = scmp.ne.s32.totalorder %s225, %s226
      %p235 = scmp.eq.s32.totalorder %s26, 0
      %p236 = por %p234, %p235
      %p237 = scmp.ne.s32.totalorder %s225, %s226
      %p238 = scmp.eq.s32.totalorder %s27, 1
      %p239 = por %p237, %p238
      %p241 = scmp.ne.s32.totalorder %s226, %s240
      %p242 = scmp.eq.s32.totalorder %s27, 0
      %p243 = por %p241, %p242
      %s245 = sadd.s32 %s244, 1
      %p248 = scmp.eq.s32.totalorder %s21, 1
      %p249 = scmp.ne.s32.totalorder %s244, %s246
      %p250 = scmp.eq.s32.totalorder %s21, 0
      %p251 = por %p249, %p250
      %p252 = scmp.ne.s32.totalorder %s244, %s246
      %p253 = scmp.eq.s32.totalorder %s26, 1
      %p254 = por %p252, %p253
      %p255 = scmp.ne.s32.totalorder %s246, %s247
      %p256 = scmp.eq.s32.totalorder %s26, 0
      %p257 = por %p255, %p256
      %p258 = scmp.ne.s32.totalorder %s246, %s247
      %p259 = scmp.eq.s32.totalorder %s27, 1
      %p260 = por %p258, %p259
      %p262 = scmp.ne.s32.totalorder %s247, %s261
      %p263 = scmp.eq.s32.totalorder %s27, 0
      %p264 = por %p262, %p263
      %s266 = sadd.s32 %s265, 1
      %p269 = scmp.eq.s32.totalorder %s21, 1
      %p270 = scmp.ne.s32.totalorder %s265, %s267
      %p271 = scmp.eq.s32.totalorder %s21, 0
      %p272 = por %p270, %p271
      %p273 = scmp.ne.s32.totalorder %s265, %s267
      %p274 = scmp.eq.s32.totalorder %s26, 1
      %p275 = por %p273, %p274
      %p276 = scmp.ne.s32.totalorder %s267, %s268
      %p277 = scmp.eq.s32.totalorder %s26, 0
      %p278 = por %p276, %p277
      %p279 = scmp.ne.s32.totalorder %s267, %s268
      %p280 = scmp.eq.s32.totalorder %s27, 1
      %p281 = por %p279, %p280
      %p283 = scmp.ne.s32.totalorder %s268, %s282
      %p284 = scmp.eq.s32.totalorder %s27, 0
      %p285 = por %p283, %p284
      %s286 = ssub.s32 %s21, %s28
      %p287 = scmp.eq.s32.totalorder %s286, 0
      %s289 = sadd.s32 %s288, 1
      %s290 = scalar_select %p287, %s288, %s289
      %p293 = pneg %p287
      %p294 = scmp.eq.s32.totalorder %s21, 1
      %p295 = por %p293, %p294
      %p296 = scmp.ne.s32.totalorder %s288, %s291
      %p297 = scmp.eq.s32.totalorder %s21, 0
      %p298 = por %p296, %p297
      %p299 = scmp.ne.s32.totalorder %s288, %s291
      %p300 = scmp.eq.s32.totalorder %s26, 1
      %p301 = por %p299, %p300
      %p302 = scmp.ne.s32.totalorder %s291, %s292
      %p303 = scmp.eq.s32.totalorder %s26, 0
      %p304 = por %p302, %p303
      %p305 = scmp.ne.s32.totalorder %s291, %s292
      %p306 = scmp.eq.s32.totalorder %s27, 1
      %p307 = por %p305, %p306
      %p309 = scmp.ne.s32.totalorder %s292, %s308
      %p310 = scmp.eq.s32.totalorder %s27, 0
      %p311 = por %p309, %p310
      %p312 = scmp.le.s32.totalorder 1, %s21
      %p313 = scmp.lt.s32.totalorder %s21, 3
      %p314 = pnand %p312, %p313
      %p315 = pneg %p314
      // Predicated region
      $region9: #{dfgar_forward.1} parent=5 // pred_check
        _
      $region10: #{dfgar_forward.1} parent=5 // pred_check_branch
        %317 = sbr.rel (%p314) target = $region12
      $region11: #{dfgar_forward.1} parent=5 // pred_region
        %s318 = ssub.s32 %s21, 1
        // Predicated region
        $region13: #{dfgar_forward.1} parent=11 // pred_check
          %p319 = pneg %p68
        $region14: #{dfgar_forward.1} parent=11 // pred_check_branch
          %321 = sbr.rel (%p319) target = $region16
        $region15: #{dfgar_forward.1} parent=11 // pred_region
          _
        $region16: #{dfgar_forward.1} parent=11 // pred_fallthru
          _
        // Predicated region
        $region17: #{dfgar_forward.1} parent=11 // pred_check
          %p322 = pneg %p89
        $region18: #{dfgar_forward.1} parent=11 // pred_check_branch
          %324 = sbr.rel (%p322) target = $region20
        $region19: #{dfgar_forward.1} parent=11 // pred_region
          _
        $region20: #{dfgar_forward.1} parent=11 // pred_fallthru
          _
        // Predicated region
        $region21: #{dfgar_forward.1} parent=11 // pred_check
          %p325 = pneg %p110
        $region22: #{dfgar_forward.1} parent=11 // pred_check_branch
          %327 = sbr.rel (%p325) target = $region24
        $region23: #{dfgar_forward.1} parent=11 // pred_region
          _
        $region24: #{dfgar_forward.1} parent=11 // pred_fallthru
          _
        // Predicated region
        $region25: #{dfgar_forward.1} parent=11 // pred_check
          %p328 = pneg %p131
        $region26: #{dfgar_forward.1} parent=11 // pred_check_branch
          %330 = sbr.rel (%p328) target = $region28
        $region27: #{dfgar_forward.1} parent=11 // pred_region
          _
        $region28: #{dfgar_forward.1} parent=11 // pred_fallthru
          _
        // Predicated region
        $region29: #{dfgar_forward.1} parent=11 // pred_check
          %p331 = pneg %p152
        $region30: #{dfgar_forward.1} parent=11 // pred_check_branch
          %333 = sbr.rel (%p331) target = $region32
        $region31: #{dfgar_forward.1} parent=11 // pred_region
          _
        $region32: #{dfgar_forward.1} parent=11 // pred_fallthru
          _
        // Predicated region
        $region33: #{dfgar_forward.1} parent=11 // pred_check
          %p334 = pneg %p173
        $region34: #{dfgar_forward.1} parent=11 // pred_check_branch
          %336 = sbr.rel (%p334) target = $region36
        $region35: #{dfgar_forward.1} parent=11 // pred_region
          _
        $region36: #{dfgar_forward.1} parent=11 // pred_fallthru
          _
        // Predicated region
        $region37: #{dfgar_forward.1} parent=11 // pred_check
          %p337 = pneg %p194
        $region38: #{dfgar_forward.1} parent=11 // pred_check_branch
          %339 = sbr.rel (%p337) target = $region40
        $region39: #{dfgar_forward.1} parent=11 // pred_region
          _
        $region40: #{dfgar_forward.1} parent=11 // pred_fallthru
          _
        // Predicated region
        $region41: #{dfgar_forward.1} parent=11 // pred_check
          %p340 = pneg %p215
        $region42: #{dfgar_forward.1} parent=11 // pred_check_branch
          %342 = sbr.rel (%p340) target = $region44
        $region43: #{dfgar_forward.1} parent=11 // pred_region
          _
        $region44: #{dfgar_forward.1} parent=11 // pred_fallthru
          _
        // Predicated region
        $region45: #{dfgar_forward.1} parent=11 // pred_check
          %p343 = pneg %p236
        $region46: #{dfgar_forward.1} parent=11 // pred_check_branch
          %345 = sbr.rel (%p343) target = $region48
        $region47: #{dfgar_forward.1} parent=11 // pred_region
          _
        $region48: #{dfgar_forward.1} parent=11 // pred_fallthru
          _
        // Predicated region
        $region49: #{dfgar_forward.1} parent=11 // pred_check
          %p346 = pneg %p257
        $region50: #{dfgar_forward.1} parent=11 // pred_check_branch
          %348 = sbr.rel (%p346) target = $region52
        $region51: #{dfgar_forward.1} parent=11 // pred_region
          _
        $region52: #{dfgar_forward.1} parent=11 // pred_fallthru
          _
        // Predicated region
        $region53: #{dfgar_forward.1} parent=11 // pred_check
          %p349 = pneg %p278
        $region54: #{dfgar_forward.1} parent=11 // pred_check_branch
          %351 = sbr.rel (%p349) target = $region56
        $region55: #{dfgar_forward.1} parent=11 // pred_region
          _
        $region56: #{dfgar_forward.1} parent=11 // pred_fallthru
          _
      $region12: #{dfgar_forward.1} parent=5 // pred_fallthru
        _
      %p352 = scmp.lt.s32.totalorder %s21, 2
      // Predicated region
      $region57: #{dfgar_forward.1} parent=5 // pred_check
        %p353 = pneg %p352
      $region58: #{dfgar_forward.1} parent=5 // pred_check_branch
        %355 = sbr.rel (%p353) target = $region60
      $region59: #{dfgar_forward.1} parent=5 // pred_region
        // Predicated region
        $region61: #{dfgar_forward.1} parent=59 // pred_check
          %p356 = pneg %p41
        $region62: #{dfgar_forward.1} parent=59 // pred_check_branch
          %358 = sbr.rel (%p356) target = $region64
        $region63: #{dfgar_forward.1} parent=59 // pred_region
          %p359 = scmp.lt.s32.totalorder %s21, 1
          %s360 = scalar_select %p359, %s21, 1
          %s361 = smul.addr %s360, 16
          %s362 = smul.addr %s361, 8
          %s363 = scalar_lea.vmem %s0, %s362
        $region64: #{dfgar_forward.1} parent=59 // pred_fallthru
          _
      $region60: #{dfgar_forward.1} parent=5 // pred_fallthru
        _
      %p364 = scmp.le.s32.totalorder 1, %s21
      %p365 = scmp.lt.s32.totalorder %s21, 3
      %p366 = pnand %p364, %p365
      %p367 = pneg %p366
      // Predicated region
      $region65: #{dfgar_forward.1} parent=5 // pred_check
        _
      $region66: #{dfgar_forward.1} parent=5 // pred_check_branch
        %369 = sbr.rel (%p366) target = $region68
      $region67: #{dfgar_forward.1} parent=5 // pred_region
        %s370 = ssub.s32 %s21, 1
        %p371 = scmp.lt.s32.totalorder %s26, 1
        %s372 = scalar_select %p371, %s26, 1
        %s373 = smul.addr %s372, 16
        %s374 = smul.addr %s373, 8
        %s375 = scalar_lea.vmem %s0, %s374
        %p376 = pneg %p47
        %p377 = pneg %p44
        %p378 = pneg %p68
        %p379 = pneg %p65
        %p380 = pneg %p89
        %p381 = pneg %p86
        %p382 = pneg %p110
        %p383 = pneg %p107
        %p384 = pneg %p131
        %p385 = pneg %p128
        %p386 = pneg %p152
        %p387 = pneg %p149
        %p388 = pneg %p173
        %p389 = pneg %p170
        %p390 = pneg %p194
        %p391 = pneg %p191
        %p392 = pneg %p215
        %p393 = pneg %p212
        %p394 = pneg %p236
        %p395 = pneg %p233
        %p396 = pneg %p257
        %p397 = pneg %p254
        %p398 = pneg %p278
        %p399 = pneg %p275
        %p400 = pneg %p304
        %p401 = pneg %p301
        %s402 = sand.u32 %s291, 1
        %s403 = scalar_lea.sflag [#allocation4], %s402
        %s404 = sand.u32 %s291, 1
        %s405 = scalar_lea.vmem [#allocation3], %s404
        %p406 = scmp.lt.s32.totalorder %s26, 1
        %s407 = scalar_select %p406, %s26, 1
        %s408 = smul.addr %s407, 16
        %s409 = smul.addr %s408, 8
        %s410 = scalar_lea.vmem %s0, %s409
        %v411 = vld [vmem:[%s410] sm:$0xff]
        %v412 = vld [vmem:[%s410 + $0x8] sm:$0xff]
        %v413 = vld [vmem:[%s410 + $0x10] sm:$0xff]
        %v414 = vld [vmem:[%s410 + $0x18] sm:$0xff]
        %v415 = vld [vmem:[%s410 + $0x20] sm:$0xff]
        %v416 = vld [vmem:[%s410 + $0x28] sm:$0xff]
        %v417 = vld [vmem:[%s410 + $0x30] sm:$0xff]
        %v418 = vld [vmem:[%s410 + $0x38] sm:$0xff]
        %v419 = vld [vmem:[%s410 + $0x40] sm:$0xff]
        %v420 = vld [vmem:[%s410 + $0x48] sm:$0xff]
        %v421 = vld [vmem:[%s410 + $0x50] sm:$0xff]
        %v422 = vld [vmem:[%s410 + $0x58] sm:$0xff]
        %v423 = vld [vmem:[%s410 + $0x60] sm:$0xff]
        %v424 = vld [vmem:[%s410 + $0x68] sm:$0xff]
        %v425 = vld [vmem:[%s410 + $0x70] sm:$0xff]
        %v426 = vld [vmem:[%s410 + $0x78] sm:$0xff]
        %v427 = vld [vmem:[%s2] sm:$0xff]
        %v428 = vld [vmem:[%s1] sm:$0x7]
        %v429 = vperm.slane %v427, 0
        %vm430 = vcmask 23552
        %v432 = vsel %vm430, %v411, 0
        %v435 = vsel %vm430, %v412, 0
        %v438 = vsel %vm430, %v413, 0
        %v441 = vsel %vm430, %v414, 0
        %v444 = vsel %vm430, %v415, 0
        %v447 = vsel %vm430, %v416, 0
        %v450 = vsel %vm430, %v417, 0
        %v453 = vsel %vm430, %v418, 0
        %v456 = vsel %vm430, %v419, 0
        %v459 = vsel %vm430, %v420, 0
        %v462 = vsel %vm430, %v421, 0
        %v465 = vsel %vm430, %v422, 0
        %v468 = vsel %vm430, %v423, 0
        %v471 = vsel %vm430, %v424, 0
        %v474 = vsel %vm430, %v425, 0
        %v477 = vsel %vm430, %v426, 0
        %vm479 = vcmask 1042432
        %v481 = vsel %vm479, %v428, 0
        %483 = vmatpush.msra.mxu0 0.0
        %484 = vmatpush.msra.mxu0 0.0
        %485 = vmatpush.msra.mxu0 0.0
        %486 = vmatpush.msra.mxu0 0.0
        %487 = vmatpush.msra.mxu0 0.0
        %488 = vmatpush.msra.mxu0 0.0
        %489 = vmatpush.msra.mxu0 0.0
        %490 = vmatpush.msra.mxu0 0.0
        %491 = vmatpush.msra.mxu0 0.0
        %492 = vmatpush.msra.mxu0 0.0
        %493 = vmatpush.msra.mxu0 0.0
        %494 = vmatpush.msra.mxu0 0.0
        %495 = vmatpush.msra.mxu0 0.0
        %496 = vmatpush.msra.mxu0 0.0
        %497 = vmatpush.msra.mxu0 0.0
        %498 = vmatpush.msra.mxu0 %v481
        %499 = vmatmul.f32.gmra.mxu0 %v432
        %v500 = vpop.f32.mrf.mxu0
        %v501 = vadd.f32 %v429, %v500
        %502 = vmatmul.f32.gmra.mxu0 %v435
        %v503 = vpop.f32.mrf.mxu0
        %v504 = vadd.f32 %v429, %v503
        %505 = vmatmul.f32.gmra.mxu0 %v438
        %v506 = vpop.f32.mrf.mxu0
        %v507 = vadd.f32 %v429, %v506
        %508 = vmatmul.f32.gmra.mxu0 %v441
        %v509 = vpop.f32.mrf.mxu0
        %v510 = vadd.f32 %v429, %v509
        %511 = vmatmul.f32.gmra.mxu0 %v444
        %v512 = vpop.f32.mrf.mxu0
        %v513 = vadd.f32 %v429, %v512
        %514 = vmatmul.f32.gmra.mxu0 %v447
        %v515 = vpop.f32.mrf.mxu0
        %v516 = vadd.f32 %v429, %v515
        %517 = vmatmul.f32.gmra.mxu0 %v450
        %v518 = vpop.f32.mrf.mxu0
        %v519 = vadd.f32 %v429, %v518
        %520 = vmatmul.f32.gmra.mxu0 %v453
        %v521 = vpop.f32.mrf.mxu0
        %v522 = vadd.f32 %v429, %v521
        %523 = vmatmul.f32.gmra.mxu0 %v456
        %v524 = vpop.f32.mrf.mxu0
        %v525 = vadd.f32 %v429, %v524
        %526 = vmatmul.f32.gmra.mxu0 %v459
        %v527 = vpop.f32.mrf.mxu0
        %v528 = vadd.f32 %v429, %v527
        %529 = vmatmul.f32.gmra.mxu0 %v462
        %v530 = vpop.f32.mrf.mxu0
        %v531 = vadd.f32 %v429, %v530
        %532 = vmatmul.f32.gmra.mxu0 %v465
        %v533 = vpop.f32.mrf.mxu0
        %v534 = vadd.f32 %v429, %v533
        %535 = vmatmul.f32.gmra.mxu0 %v468
        %v536 = vpop.f32.mrf.mxu0
        %v537 = vadd.f32 %v429, %v536
        %538 = vmatmul.f32.gmra.mxu0 %v471
        %v539 = vpop.f32.mrf.mxu0
        %v540 = vadd.f32 %v429, %v539
        %541 = vmatmul.f32.gmra.mxu0 %v474
        %v542 = vpop.f32.mrf.mxu0
        %v543 = vadd.f32 %v429, %v542
        %544 = vmatmul.f32.gmra.mxu0 %v477
        %v545 = vpop.f32.mrf.mxu0
        %v546 = vadd.f32 %v429, %v545
        %547 = vdwg.mxu0
        %v548 = vld [vmem:[%s3] sm:$0xff]
        %v549 = vld [vmem:[%s3 + $0x8] sm:$0xff]
        %v550 = vadd.f32 %v501, %v548
        %v551 = vadd.f32 %v504, %v549
        %v552 = vadd.f32 %v507, %v548
        %v553 = vadd.f32 %v510, %v549
        %v554 = vadd.f32 %v513, %v548
        %v555 = vadd.f32 %v516, %v549
        %v556 = vadd.f32 %v519, %v548
        %v557 = vadd.f32 %v522, %v549
        %v558 = vadd.f32 %v525, %v548
        %v559 = vadd.f32 %v528, %v549
        %v560 = vadd.f32 %v531, %v548
        %v561 = vadd.f32 %v534, %v549
        %v562 = vadd.f32 %v537, %v548
        %v563 = vadd.f32 %v540, %v549
        %v564 = vadd.f32 %v543, %v548
        %v565 = vadd.f32 %v546, %v549
        %v566 = vld [vmem:[%s4] sm:$0xff]
        %vm567 = vcmask 261120
        %v569 = vsel %vm567, %v566, 0
        %v572 = vsel %vm567, %v550, 0
        %v575 = vsel %vm567, %v551, 0
        %577 = vmatpush.xpose.msra.mxu0 0.0
        %578 = vmatpush.xpose.msra.mxu0 0.0
        %579 = vmatpush.xpose.msra.mxu0 0.0
        %580 = vmatpush.xpose.msra.mxu0 0.0
        %581 = vmatpush.xpose.msra.mxu0 0.0
        %582 = vmatpush.xpose.msra.mxu0 0.0
        %583 = vmatpush.xpose.msra.mxu0 0.0
        %584 = vmatpush.xpose.msra.mxu0 0.0
        %585 = vmatpush.xpose.msra.mxu0 0.0
        %586 = vmatpush.xpose.msra.mxu0 0.0
        %587 = vmatpush.xpose.msra.mxu0 0.0
        %588 = vmatpush.xpose.msra.mxu0 0.0
        %589 = vmatpush.xpose.msra.mxu0 0.0
        %590 = vmatpush.xpose.msra.mxu0 0.0
        %591 = vmatpush.xpose.msra.mxu0 %v575
        %592 = vmatpush.xpose.msra.mxu0 %v572
        %593 = vmatmul.f32.gmra.mxu0 %v569
        %v594 = vpop.f32.mrf.mxu0
        %v595 = vadd.f32 0.0, %v594
        %596 = vdwg.mxu0
        %v598 = vsel %vm567, %v552, 0
        %v601 = vsel %vm567, %v553, 0
        %603 = vmatpush.xpose.msra.mxu0 0.0
        %604 = vmatpush.xpose.msra.mxu0 0.0
        %605 = vmatpush.xpose.msra.mxu0 0.0
        %606 = vmatpush.xpose.msra.mxu0 0.0
        %607 = vmatpush.xpose.msra.mxu0 0.0
        %608 = vmatpush.xpose.msra.mxu0 0.0
        %609 = vmatpush.xpose.msra.mxu0 0.0
        %610 = vmatpush.xpose.msra.mxu0 0.0
        %611 = vmatpush.xpose.msra.mxu0 0.0
        %612 = vmatpush.xpose.msra.mxu0 0.0
        %613 = vmatpush.xpose.msra.mxu0 0.0
        %614 = vmatpush.xpose.msra.mxu0 0.0
        %615 = vmatpush.xpose.msra.mxu0 0.0
        %616 = vmatpush.xpose.msra.mxu0 0.0
        %617 = vmatpush.xpose.msra.mxu0 %v601
        %618 = vmatpush.xpose.msra.mxu0 %v598
        %619 = vmatmul.f32.gmra.mxu0 %v569
        %v620 = vpop.f32.mrf.mxu0
        %v621 = vadd.f32 0.0, %v620
        %622 = vdwg.mxu0
        %v624 = vsel %vm567, %v554, 0
        %v627 = vsel %vm567, %v555, 0
        %629 = vmatpush.xpose.msra.mxu0 0.0
        %630 = vmatpush.xpose.msra.mxu0 0.0
        %631 = vmatpush.xpose.msra.mxu0 0.0
        %632 = vmatpush.xpose.msra.mxu0 0.0
        %633 = vmatpush.xpose.msra.mxu0 0.0
        %634 = vmatpush.xpose.msra.mxu0 0.0
        %635 = vmatpush.xpose.msra.mxu0 0.0
        %636 = vmatpush.xpose.msra.mxu0 0.0
        %637 = vmatpush.xpose.msra.mxu0 0.0
        %638 = vmatpush.xpose.msra.mxu0 0.0
        %639 = vmatpush.xpose.msra.mxu0 0.0
        %640 = vmatpush.xpose.msra.mxu0 0.0
        %641 = vmatpush.xpose.msra.mxu0 0.0
        %642 = vmatpush.xpose.msra.mxu0 0.0
        %643 = vmatpush.xpose.msra.mxu0 %v627
        %644 = vmatpush.xpose.msra.mxu0 %v624
        %645 = vmatmul.f32.gmra.mxu0 %v569
        %v646 = vpop.f32.mrf.mxu0
        %v647 = vadd.f32 0.0, %v646
        %648 = vdwg.mxu0
        %v650 = vsel %vm567, %v556, 0
        %v653 = vsel %vm567, %v557, 0
        %655 = vmatpush.xpose.msra.mxu0 0.0
        %656 = vmatpush.xpose.msra.mxu0 0.0
        %657 = vmatpush.xpose.msra.mxu0 0.0
        %658 = vmatpush.xpose.msra.mxu0 0.0
        %659 = vmatpush.xpose.msra.mxu0 0.0
        %660 = vmatpush.xpose.msra.mxu0 0.0
        %661 = vmatpush.xpose.msra.mxu0 0.0
        %662 = vmatpush.xpose.msra.mxu0 0.0
        %663 = vmatpush.xpose.msra.mxu0 0.0
        %664 = vmatpush.xpose.msra.mxu0 0.0
        %665 = vmatpush.xpose.msra.mxu0 0.0
        %666 = vmatpush.xpose.msra.mxu0 0.0
        %667 = vmatpush.xpose.msra.mxu0 0.0
        %668 = vmatpush.xpose.msra.mxu0 0.0
        %669 = vmatpush.xpose.msra.mxu0 %v653
        %670 = vmatpush.xpose.msra.mxu0 %v650
        %671 = vmatmul.f32.gmra.mxu0 %v569
        %v672 = vpop.f32.mrf.mxu0
        %v673 = vadd.f32 0.0, %v672
        %674 = vdwg.mxu0
        %v676 = vsel %vm567, %v558, 0
        %v679 = vsel %vm567, %v559, 0
        %681 = vmatpush.xpose.msra.mxu0 0.0
        %682 = vmatpush.xpose.msra.mxu0 0.0
        %683 = vmatpush.xpose.msra.mxu0 0.0
        %684 = vmatpush.xpose.msra.mxu0 0.0
        %685 = vmatpush.xpose.msra.mxu0 0.0
        %686 = vmatpush.xpose.msra.mxu0 0.0
        %687 = vmatpush.xpose.msra.mxu0 0.0
        %688 = vmatpush.xpose.msra.mxu0 0.0
        %689 = vmatpush.xpose.msra.mxu0 0.0
        %690 = vmatpush.xpose.msra.mxu0 0.0
        %691 = vmatpush.xpose.msra.mxu0 0.0
        %692 = vmatpush.xpose.msra.mxu0 0.0
        %693 = vmatpush.xpose.msra.mxu0 0.0
        %694 = vmatpush.xpose.msra.mxu0 0.0
        %695 = vmatpush.xpose.msra.mxu0 %v679
        %696 = vmatpush.xpose.msra.mxu0 %v676
        %697 = vmatmul.f32.gmra.mxu0 %v569
        %v698 = vpop.f32.mrf.mxu0
        %v699 = vadd.f32 0.0, %v698
        %700 = vdwg.mxu0
        %v702 = vsel %vm567, %v560, 0
        %v705 = vsel %vm567, %v561, 0
        %707 = vmatpush.xpose.msra.mxu0 0.0
        %708 = vmatpush.xpose.msra.mxu0 0.0
        %709 = vmatpush.xpose.msra.mxu0 0.0
        %710 = vmatpush.xpose.msra.mxu0 0.0
        %711 = vmatpush.xpose.msra.mxu0 0.0
        %712 = vmatpush.xpose.msra.mxu0 0.0
        %713 = vmatpush.xpose.msra.mxu0 0.0
        %714 = vmatpush.xpose.msra.mxu0 0.0
        %715 = vmatpush.xpose.msra.mxu0 0.0
        %716 = vmatpush.xpose.msra.mxu0 0.0
        %717 = vmatpush.xpose.msra.mxu0 0.0
        %718 = vmatpush.xpose.msra.mxu0 0.0
        %719 = vmatpush.xpose.msra.mxu0 0.0
        %720 = vmatpush.xpose.msra.mxu0 0.0
        %721 = vmatpush.xpose.msra.mxu0 %v705
        %722 = vmatpush.xpose.msra.mxu0 %v702
        %723 = vmatmul.f32.gmra.mxu0 %v569
        %v724 = vpop.f32.mrf.mxu0
        %v725 = vadd.f32 0.0, %v724
        %726 = vdwg.mxu0
        %v728 = vsel %vm567, %v562, 0
        %v731 = vsel %vm567, %v563, 0
        %733 = vmatpush.xpose.msra.mxu0 0.0
        %734 = vmatpush.xpose.msra.mxu0 0.0
        %735 = vmatpush.xpose.msra.mxu0 0.0
        %736 = vmatpush.xpose.msra.mxu0 0.0
        %737 = vmatpush.xpose.msra.mxu0 0.0
        %738 = vmatpush.xpose.msra.mxu0 0.0
        %739 = vmatpush.xpose.msra.mxu0 0.0
        %740 = vmatpush.xpose.msra.mxu0 0.0
        %741 = vmatpush.xpose.msra.mxu0 0.0
        %742 = vmatpush.xpose.msra.mxu0 0.0
        %743 = vmatpush.xpose.msra.mxu0 0.0
        %744 = vmatpush.xpose.msra.mxu0 0.0
        %745 = vmatpush.xpose.msra.mxu0 0.0
        %746 = vmatpush.xpose.msra.mxu0 0.0
        %747 = vmatpush.xpose.msra.mxu0 %v731
        %748 = vmatpush.xpose.msra.mxu0 %v728
        %749 = vmatmul.f32.gmra.mxu0 %v569
        %v750 = vpop.f32.mrf.mxu0
        %v751 = vadd.f32 0.0, %v750
        %752 = vdwg.mxu0
        %v754 = vsel %vm567, %v564, 0
        %v757 = vsel %vm567, %v565, 0
        %759 = vmatpush.xpose.msra.mxu0 0.0
        %760 = vmatpush.xpose.msra.mxu0 0.0
        %761 = vmatpush.xpose.msra.mxu0 0.0
        %762 = vmatpush.xpose.msra.mxu0 0.0
        %763 = vmatpush.xpose.msra.mxu0 0.0
        %764 = vmatpush.xpose.msra.mxu0 0.0
        %765 = vmatpush.xpose.msra.mxu0 0.0
        %766 = vmatpush.xpose.msra.mxu0 0.0
        %767 = vmatpush.xpose.msra.mxu0 0.0
        %768 = vmatpush.xpose.msra.mxu0 0.0
        %769 = vmatpush.xpose.msra.mxu0 0.0
        %770 = vmatpush.xpose.msra.mxu0 0.0
        %771 = vmatpush.xpose.msra.mxu0 0.0
        %772 = vmatpush.xpose.msra.mxu0 0.0
        %773 = vmatpush.xpose.msra.mxu0 %v757
        %774 = vmatpush.xpose.msra.mxu0 %v754
        %775 = vmatmul.f32.gmra.mxu0 %v569
        %v776 = vpop.f32.mrf.mxu0
        %v777 = vadd.f32 0.0, %v776
        %778 = vdwg.mxu0
        %v779 = vmul.f32 %v595, 0.17677669
        %v780 = vmul.f32 %v621, 0.17677669
        %v781 = vmul.f32 %v647, 0.17677669
        %v782 = vmul.f32 %v673, 0.17677669
        %v783 = vmul.f32 %v699, 0.17677669
        %v784 = vmul.f32 %v725, 0.17677669
        %v785 = vmul.f32 %v751, 0.17677669
        %v786 = vmul.f32 %v777, 0.17677669
        %vm787 = vcmask 130048
        %v788 = vsel %vm787, %v779, -inf
        %789 = vmax.xlane.f32.xlu0 %v788
        %v790 = vpop.xlane.xlu0 %789
        %v791 = vsel %vm787, %v780, -inf
        %792 = vmax.xlane.f32.xlu0 %v791
        %v793 = vpop.xlane.xlu0 %792
        %v794 = vsel %vm787, %v781, -inf
        %795 = vmax.xlane.f32.xlu0 %v794
        %v796 = vpop.xlane.xlu0 %795
        %v797 = vsel %vm787, %v782, -inf
        %798 = vmax.xlane.f32.xlu0 %v797
        %v799 = vpop.xlane.xlu0 %798
        %v800 = vsel %vm787, %v783, -inf
        %801 = vmax.xlane.f32.xlu0 %v800
        %v802 = vpop.xlane.xlu0 %801
        %v803 = vsel %vm787, %v784, -inf
        %804 = vmax.xlane.f32.xlu0 %v803
        %v805 = vpop.xlane.xlu0 %804
        %v806 = vsel %vm787, %v785, -inf
        %807 = vmax.xlane.f32.xlu0 %v806
        %v808 = vpop.xlane.xlu0 %807
        %v809 = vsel %vm787, %v786, -inf
        %810 = vmax.xlane.f32.xlu0 %v809
        %v811 = vpop.xlane.xlu0 %810
        %v812 = vsub.f32 %v779, %v790
        %v813 = vsub.f32 %v780, %v793
        %v814 = vsub.f32 %v781, %v796
        %v815 = vsub.f32 %v782, %v799
        %v816 = vsub.f32 %v783, %v802
        %v817 = vsub.f32 %v784, %v805
        %v818 = vsub.f32 %v785, %v808
        %v819 = vsub.f32 %v786, %v811
        %v820 = vmul.f32 %v812, 1.442695
        %v821 = vpow.pop %v820
        %v822 = vmul.f32 %v813, 1.442695
        %v823 = vpow.pop %v822
        %v824 = vmul.f32 %v814, 1.442695
        %v825 = vpow.pop %v824
        %v826 = vmul.f32 %v815, 1.442695
        %v827 = vpow.pop %v826
        %v828 = vmul.f32 %v816, 1.442695
        %v829 = vpow.pop %v828
        %v830 = vmul.f32 %v817, 1.442695
        %v831 = vpow.pop %v830
        %v832 = vmul.f32 %v818, 1.442695
        %v833 = vpow.pop %v832
        %v834 = vmul.f32 %v819, 1.442695
        %v835 = vpow.pop %v834
        %v836 = vsel %vm787, %v821, 0.0
        %837 = vadd.xlane.f32.xlu0 %v836
        %v838 = vpop.xlane.xlu0 %837
        %v839 = vsel %vm787, %v823, 0.0
        %840 = vadd.xlane.f32.xlu0 %v839
        %v841 = vpop.xlane.xlu0 %840
        %v842 = vsel %vm787, %v825, 0.0
        %843 = vadd.xlane.f32.xlu0 %v842
        %v844 = vpop.xlane.xlu0 %843
        %v845 = vsel %vm787, %v827, 0.0
        %846 = vadd.xlane.f32.xlu0 %v845
        %v847 = vpop.xlane.xlu0 %846
        %v848 = vsel %vm787, %v829, 0.0
        %849 = vadd.xlane.f32.xlu0 %v848
        %v850 = vpop.xlane.xlu0 %849
        %v851 = vsel %vm787, %v831, 0.0
        %852 = vadd.xlane.f32.xlu0 %v851
        %v853 = vpop.xlane.xlu0 %852
        %v854 = vsel %vm787, %v833, 0.0
        %855 = vadd.xlane.f32.xlu0 %v854
        %v856 = vpop.xlane.xlu0 %855
        %v857 = vsel %vm787, %v835, 0.0
        %858 = vadd.xlane.f32.xlu0 %v857
        %v859 = vpop.xlane.xlu0 %858
        %v860 = vrcp.pop %v838
        %v861 = vmul.f32 %v838, %v860
        %v862 = vsub.f32 1.0, %v861
        %v863 = vmul.f32 %v860, %v862
        %v864 = vadd.f32 %v860, %v863
        %vm865 = vweird.f32 %v838
        %vm866 = vweird.f32 %v860
        %vm867 = vmor %vm865, %vm866
        %v868 = vsel %vm867, %v860, %v864
        %v869 = vand.u32 2147483647, %v838
        %vm870 = vcmp.eq.f32.partialorder %v869, 8.507059e+37
        %v871 = vand.u32 %v838, 2147483648
        %v872 = vor.u32 1.1754944e-38, %v871
        %v873 = vsel %vm870, %v872, %v868
        %v874 = vmul.f32 %v821, %v873
        %v875 = vrcp.pop %v841
        %v876 = vmul.f32 %v841, %v875
        %v877 = vsub.f32 1.0, %v876
        %v878 = vmul.f32 %v875, %v877
        %v879 = vadd.f32 %v875, %v878
        %vm880 = vweird.f32 %v841
        %vm881 = vweird.f32 %v875
        %vm882 = vmor %vm880, %vm881
        %v883 = vsel %vm882, %v875, %v879
        %v884 = vand.u32 2147483647, %v841
        %vm885 = vcmp.eq.f32.partialorder %v884, 8.507059e+37
        %v886 = vand.u32 %v841, 2147483648
        %v887 = vor.u32 1.1754944e-38, %v886
        %v888 = vsel %vm885, %v887, %v883
        %v889 = vmul.f32 %v823, %v888
        %v890 = vrcp.pop %v844
        %v891 = vmul.f32 %v844, %v890
        %v892 = vsub.f32 1.0, %v891
        %v893 = vmul.f32 %v890, %v892
        %v894 = vadd.f32 %v890, %v893
        %vm895 = vweird.f32 %v844
        %vm896 = vweird.f32 %v890
        %vm897 = vmor %vm895, %vm896
        %v898 = vsel %vm897, %v890, %v894
        %v899 = vand.u32 2147483647, %v844
        %vm900 = vcmp.eq.f32.partialorder %v899, 8.507059e+37
        %v901 = vand.u32 %v844, 2147483648
        %v902 = vor.u32 1.1754944e-38, %v901
        %v903 = vsel %vm900, %v902, %v898
        %v904 = vmul.f32 %v825, %v903
        %v905 = vrcp.pop %v847
        %v906 = vmul.f32 %v847, %v905
        %v907 = vsub.f32 1.0, %v906
        %v908 = vmul.f32 %v905, %v907
        %v909 = vadd.f32 %v905, %v908
        %vm910 = vweird.f32 %v847
        %vm911 = vweird.f32 %v905
        %vm912 = vmor %vm910, %vm911
        %v913 = vsel %vm912, %v905, %v909
        %v914 = vand.u32 2147483647, %v847
        %vm915 = vcmp.eq.f32.partialorder %v914, 8.507059e+37
        %v916 = vand.u32 %v847, 2147483648
        %v917 = vor.u32 1.1754944e-38, %v916
        %v918 = vsel %vm915, %v917, %v913
        %v919 = vmul.f32 %v827, %v918
        %v920 = vrcp.pop %v850
        %v921 = vmul.f32 %v850, %v920
        %v922 = vsub.f32 1.0, %v921
        %v923 = vmul.f32 %v920, %v922
        %v924 = vadd.f32 %v920, %v923
        %vm925 = vweird.f32 %v850
        %vm926 = vweird.f32 %v920
        %vm927 = vmor %vm925, %vm926
        %v928 = vsel %vm927, %v920, %v924
        %v929 = vand.u32 2147483647, %v850
        %vm930 = vcmp.eq.f32.partialorder %v929, 8.507059e+37
        %v931 = vand.u32 %v850, 2147483648
        %v932 = vor.u32 1.1754944e-38, %v931
        %v933 = vsel %vm930, %v932, %v928
        %v934 = vmul.f32 %v829, %v933
        %v935 = vrcp.pop %v853
        %v936 = vmul.f32 %v853, %v935
        %v937 = vsub.f32 1.0, %v936
        %v938 = vmul.f32 %v935, %v937
        %v939 = vadd.f32 %v935, %v938
        %vm940 = vweird.f32 %v853
        %vm941 = vweird.f32 %v935
        %vm942 = vmor %vm940, %vm941
        %v943 = vsel %vm942, %v935, %v939
        %v944 = vand.u32 2147483647, %v853
        %vm945 = vcmp.eq.f32.partialorder %v944, 8.507059e+37
        %v946 = vand.u32 %v853, 2147483648
        %v947 = vor.u32 1.1754944e-38, %v946
        %v948 = vsel %vm945, %v947, %v943
        %v949 = vmul.f32 %v831, %v948
        %v950 = vrcp.pop %v856
        %v951 = vmul.f32 %v856, %v950
        %v952 = vsub.f32 1.0, %v951
        %v953 = vmul.f32 %v950, %v952
        %v954 = vadd.f32 %v950, %v953
        %vm955 = vweird.f32 %v856
        %vm956 = vweird.f32 %v950
        %vm957 = vmor %vm955, %vm956
        %v958 = vsel %vm957, %v950, %v954
        %v959 = vand.u32 2147483647, %v856
        %vm960 = vcmp.eq.f32.partialorder %v959, 8.507059e+37
        %v961 = vand.u32 %v856, 2147483648
        %v962 = vor.u32 1.1754944e-38, %v961
        %v963 = vsel %vm960, %v962, %v958
        %v964 = vmul.f32 %v833, %v963
        %v965 = vrcp.pop %v859
        %v966 = vmul.f32 %v859, %v965
        %v967 = vsub.f32 1.0, %v966
        %v968 = vmul.f32 %v965, %v967
        %v969 = vadd.f32 %v965, %v968
        %vm970 = vweird.f32 %v859
        %vm971 = vweird.f32 %v965
        %vm972 = vmor %vm970, %vm971
        %v973 = vsel %vm972, %v965, %v969
        %v974 = vand.u32 2147483647, %v859
        %vm975 = vcmp.eq.f32.partialorder %v974, 8.507059e+37
        %v976 = vand.u32 %v859, 2147483648
        %v977 = vor.u32 1.1754944e-38, %v976
        %v978 = vsel %vm975, %v977, %v973
        %v979 = vmul.f32 %v835, %v978
        %v981 = vsel %vm787, %v874, 0
        %983 = vmatpush.msra.mxu0 0.0
        %984 = vmatpush.msra.mxu0 0.0
        %985 = vmatpush.msra.mxu0 0.0
        %986 = vmatpush.msra.mxu0 0.0
        %987 = vmatpush.msra.mxu0 0.0
        %988 = vmatpush.msra.mxu0 0.0
        %989 = vmatpush.msra.mxu0 0.0
        %990 = vmatpush.msra.mxu0 0.0
        %991 = vmatpush.msra.mxu0 0.0
        %992 = vmatpush.msra.mxu0 0.0
        %993 = vmatpush.msra.mxu0 0.0
        %994 = vmatpush.msra.mxu0 0.0
        %995 = vmatpush.msra.mxu0 0.0
        %996 = vmatpush.msra.mxu0 0.0
        %997 = vmatpush.msra.mxu0 %v504
        %998 = vmatpush.msra.mxu0 %v501
        %999 = vmatmul.f32.gmra.mxu0 %v981
        %v1000 = vpop.f32.mrf.mxu0
        %v1001 = vadd.f32 0.0, %v1000
        %1002 = vdwg.mxu0
        %v1004 = vsel %vm787, %v889, 0
        %1006 = vmatpush.msra.mxu0 0.0
        %1007 = vmatpush.msra.mxu0 0.0
        %1008 = vmatpush.msra.mxu0 0.0
        %1009 = vmatpush.msra.mxu0 0.0
        %1010 = vmatpush.msra.mxu0 0.0
        %1011 = vmatpush.msra.mxu0 0.0
        %1012 = vmatpush.msra.mxu0 0.0
        %1013 = vmatpush.msra.mxu0 0.0
        %1014 = vmatpush.msra.mxu0 0.0
        %1015 = vmatpush.msra.mxu0 0.0
        %1016 = vmatpush.msra.mxu0 0.0
        %1017 = vmatpush.msra.mxu0 0.0
        %1018 = vmatpush.msra.mxu0 0.0
        %1019 = vmatpush.msra.mxu0 0.0
        %1020 = vmatpush.msra.mxu0 %v510
        %1021 = vmatpush.msra.mxu0 %v507
        %1022 = vmatmul.f32.gmra.mxu0 %v1004
        %v1023 = vpop.f32.mrf.mxu0
        %v1024 = vadd.f32 0.0, %v1023
        %1025 = vdwg.mxu0
        %v1027 = vsel %vm787, %v904, 0
        %1029 = vmatpush.msra.mxu0 0.0
        %1030 = vmatpush.msra.mxu0 0.0
        %1031 = vmatpush.msra.mxu0 0.0
        %1032 = vmatpush.msra.mxu0 0.0
        %1033 = vmatpush.msra.mxu0 0.0
        %1034 = vmatpush.msra.mxu0 0.0
        %1035 = vmatpush.msra.mxu0 0.0
        %1036 = vmatpush.msra.mxu0 0.0
        %1037 = vmatpush.msra.mxu0 0.0
        %1038 = vmatpush.msra.mxu0 0.0
        %1039 = vmatpush.msra.mxu0 0.0
        %1040 = vmatpush.msra.mxu0 0.0
        %1041 = vmatpush.msra.mxu0 0.0
        %1042 = vmatpush.msra.mxu0 0.0
        %1043 = vmatpush.msra.mxu0 %v516
        %1044 = vmatpush.msra.mxu0 %v513
        %1045 = vmatmul.f32.gmra.mxu0 %v1027
        %v1046 = vpop.f32.mrf.mxu0
        %v1047 = vadd.f32 0.0, %v1046
        %1048 = vdwg.mxu0
        %v1050 = vsel %vm787, %v919, 0
        %1052 = vmatpush.msra.mxu0 0.0
        %1053 = vmatpush.msra.mxu0 0.0
        %1054 = vmatpush.msra.mxu0 0.0
        %1055 = vmatpush.msra.mxu0 0.0
        %1056 = vmatpush.msra.mxu0 0.0
        %1057 = vmatpush.msra.mxu0 0.0
        %1058 = vmatpush.msra.mxu0 0.0
        %1059 = vmatpush.msra.mxu0 0.0
        %1060 = vmatpush.msra.mxu0 0.0
        %1061 = vmatpush.msra.mxu0 0.0
        %1062 = vmatpush.msra.mxu0 0.0
        %1063 = vmatpush.msra.mxu0 0.0
        %1064 = vmatpush.msra.mxu0 0.0
        %1065 = vmatpush.msra.mxu0 0.0
        %1066 = vmatpush.msra.mxu0 %v522
        %1067 = vmatpush.msra.mxu0 %v519
        %1068 = vmatmul.f32.gmra.mxu0 %v1050
        %v1069 = vpop.f32.mrf.mxu0
        %v1070 = vadd.f32 0.0, %v1069
        %1071 = vdwg.mxu0
        %v1073 = vsel %vm787, %v934, 0
        %1075 = vmatpush.msra.mxu0 0.0
        %1076 = vmatpush.msra.mxu0 0.0
        %1077 = vmatpush.msra.mxu0 0.0
        %1078 = vmatpush.msra.mxu0 0.0
        %1079 = vmatpush.msra.mxu0 0.0
        %1080 = vmatpush.msra.mxu0 0.0
        %1081 = vmatpush.msra.mxu0 0.0
        %1082 = vmatpush.msra.mxu0 0.0
        %1083 = vmatpush.msra.mxu0 0.0
        %1084 = vmatpush.msra.mxu0 0.0
        %1085 = vmatpush.msra.mxu0 0.0
        %1086 = vmatpush.msra.mxu0 0.0
        %1087 = vmatpush.msra.mxu0 0.0
        %1088 = vmatpush.msra.mxu0 0.0
        %1089 = vmatpush.msra.mxu0 %v528
        %1090 = vmatpush.msra.mxu0 %v525
        %1091 = vmatmul.f32.gmra.mxu0 %v1073
        %v1092 = vpop.f32.mrf.mxu0
        %v1093 = vadd.f32 0.0, %v1092
        %1094 = vdwg.mxu0
        %v1096 = vsel %vm787, %v949, 0
        %1098 = vmatpush.msra.mxu0 0.0
        %1099 = vmatpush.msra.mxu0 0.0
        %1100 = vmatpush.msra.mxu0 0.0
        %1101 = vmatpush.msra.mxu0 0.0
        %1102 = vmatpush.msra.mxu0 0.0
        %1103 = vmatpush.msra.mxu0 0.0
        %1104 = vmatpush.msra.mxu0 0.0
        %1105 = vmatpush.msra.mxu0 0.0
        %1106 = vmatpush.msra.mxu0 0.0
        %1107 = vmatpush.msra.mxu0 0.0
        %1108 = vmatpush.msra.mxu0 0.0
        %1109 = vmatpush.msra.mxu0 0.0
        %1110 = vmatpush.msra.mxu0 0.0
        %1111 = vmatpush.msra.mxu0 0.0
        %1112 = vmatpush.msra.mxu0 %v534
        %1113 = vmatpush.msra.mxu0 %v531
        %1114 = vmatmul.f32.gmra.mxu0 %v1096
        %v1115 = vpop.f32.mrf.mxu0
        %v1116 = vadd.f32 0.0, %v1115
        %1117 = vdwg.mxu0
        %v1119 = vsel %vm787, %v964, 0
        %1121 = vmatpush.msra.mxu0 0.0
        %1122 = vmatpush.msra.mxu0 0.0
        %1123 = vmatpush.msra.mxu0 0.0
        %1124 = vmatpush.msra.mxu0 0.0
        %1125 = vmatpush.msra.mxu0 0.0
        %1126 = vmatpush.msra.mxu0 0.0
        %1127 = vmatpush.msra.mxu0 0.0
        %1128 = vmatpush.msra.mxu0 0.0
        %1129 = vmatpush.msra.mxu0 0.0
        %1130 = vmatpush.msra.mxu0 0.0
        %1131 = vmatpush.msra.mxu0 0.0
        %1132 = vmatpush.msra.mxu0 0.0
        %1133 = vmatpush.msra.mxu0 0.0
        %1134 = vmatpush.msra.mxu0 0.0
        %1135 = vmatpush.msra.mxu0 %v540
        %1136 = vmatpush.msra.mxu0 %v537
        %1137 = vmatmul.f32.gmra.mxu0 %v1119
        %v1138 = vpop.f32.mrf.mxu0
        %v1139 = vadd.f32 0.0, %v1138
        %1140 = vdwg.mxu0
        %v1142 = vsel %vm787, %v979, 0
        %1144 = vmatpush.msra.mxu0 0.0
        %1145 = vmatpush.msra.mxu0 0.0
        %1146 = vmatpush.msra.mxu0 0.0
        %1147 = vmatpush.msra.mxu0 0.0
        %1148 = vmatpush.msra.mxu0 0.0
        %1149 = vmatpush.msra.mxu0 0.0
        %1150 = vmatpush.msra.mxu0 0.0
        %1151 = vmatpush.msra.mxu0 0.0
        %1152 = vmatpush.msra.mxu0 0.0
        %1153 = vmatpush.msra.mxu0 0.0
        %1154 = vmatpush.msra.mxu0 0.0
        %1155 = vmatpush.msra.mxu0 0.0
        %1156 = vmatpush.msra.mxu0 0.0
        %1157 = vmatpush.msra.mxu0 0.0
        %1158 = vmatpush.msra.mxu0 %v546
        %1159 = vmatpush.msra.mxu0 %v543
        %1160 = vmatmul.f32.gmra.mxu0 %v1142
        %v1161 = vpop.f32.mrf.mxu0
        %v1162 = vadd.f32 0.0, %v1161
        %1163 = vdwg.mxu0
        %1164 = vst.msk [vmem:[#allocation2] sm:$0xff] %vm567, 0.0
        %s1165 = scalar_lea.vmem [#allocation2], 72
        %1166 = vst.msk [vmem:[%s1165] sm:$0xff] %vm567, 0.0
        %v1167 = vld [vmem:[%s5] sm:$0xff]
        %v1168 = vld [vmem:[%s5 + $0x8] sm:$0xff]
        %v1169 = vld [vmem:[%s5 + $0x10] sm:$0xff]
        %v1170 = vld [vmem:[%s5 + $0x18] sm:$0xff]
        %v1171 = vld [vmem:[%s5 + $0x20] sm:$0xff]
        %v1172 = vld [vmem:[%s5 + $0x28] sm:$0xff]
        %v1173 = vld [vmem:[%s5 + $0x30] sm:$0xff]
        %v1174 = vld [vmem:[%s5 + $0x38] sm:$0xff]
        %v1175 = vld [vmem:[%s5 + $0x40] sm:$0xff]
        %v1176 = vld [vmem:[%s5 + $0x48] sm:$0xff]
        %v1177 = vld [vmem:[%s5 + $0x50] sm:$0xff]
        %v1178 = vld [vmem:[%s5 + $0x58] sm:$0xff]
        %s1179 = scalar_lea.vmem [#allocation2], 8
        %1180 = vst.msk [vmem:[%s1179] sm:$0xff] %vm567, %v1001
        %1181 = vst.msk [vmem:[%s1179 + $0x8] sm:$0xff] %vm567, %v1024
        %1182 = vst.msk [vmem:[%s1179 + $0x10] sm:$0xff] %vm567, %v1047
        %1183 = vst.msk [vmem:[%s1179 + $0x18] sm:$0xff] %vm567, %v1070
        %1184 = vst.msk [vmem:[%s1179 + $0x20] sm:$0xff] %vm567, %v1093
        %1185 = vst.msk [vmem:[%s1179 + $0x28] sm:$0xff] %vm567, %v1116
        %1186 = vst.msk [vmem:[%s1179 + $0x30] sm:$0xff] %vm567, %v1139
        %1187 = vst.msk [vmem:[%s1179 + $0x38] sm:$0xff] %vm567, %v1162
        %v1188 = vld [vmem:[#allocation2] sm:$0xff]
        %v1189 = vld [vmem:[#allocation2 + $0x8] sm:$0xff]
        %v1190 = vld [vmem:[#allocation2 + $0x10] sm:$0xff]
        %v1191 = vld [vmem:[#allocation2 + $0x18] sm:$0xff]
        %v1192 = vld [vmem:[#allocation2 + $0x20] sm:$0xff]
        %v1193 = vld [vmem:[#allocation2 + $0x28] sm:$0xff]
        %v1194 = vld [vmem:[#allocation2 + $0x30] sm:$0xff]
        %v1195 = vld [vmem:[#allocation2 + $0x38] sm:$0xff]
        %v1196 = vld [vmem:[#allocation2 + $0x40] sm:$0xff]
        %v1197 = vld [vmem:[#allocation2 + $0x48] sm:$0xff]
        %v1199 = vsel %vm567, %v1188, 0
        %v1202 = vsel %vm567, %v1189, 0
        %v1205 = vsel %vm567, %v1190, 0
        %v1208 = vsel %vm567, %v1191, 0
        %v1211 = vsel %vm567, %v1192, 0
        %v1214 = vsel %vm567, %v1193, 0
        %v1217 = vsel %vm567, %v1194, 0
        %v1220 = vsel %vm567, %v1195, 0
        %1222 = vmatpush.msra.mxu0 0.0
        %1223 = vmatpush.msra.mxu0 0.0
        %1224 = vmatpush.msra.mxu0 0.0
        %1225 = vmatpush.msra.mxu0 0.0
        %1226 = vmatpush.msra.mxu0 0.0
        %1227 = vmatpush.msra.mxu0 0.0
        %1228 = vmatpush.msra.mxu0 0.0
        %1229 = vmatpush.msra.mxu0 0.0
        %1230 = vmatpush.msra.mxu0 0.0
        %1231 = vmatpush.msra.mxu0 0.0
        %1232 = vmatpush.msra.mxu0 0.0
        %1233 = vmatpush.msra.mxu0 0.0
        %1234 = vmatpush.msra.mxu0 %v1170
        %1235 = vmatpush.msra.mxu0 %v1169
        %1236 = vmatpush.msra.mxu0 %v1168
        %1237 = vmatpush.msra.mxu0 %v1167
        %1238 = vmatmul.f32.gmra.mxu0 %v1199
        %v1239 = vpop.f32.mrf.mxu0
        %v1240 = vadd.f32 0.0, %v1239
        %1241 = vmatmul.f32.gmra.mxu0 %v1202
        %v1242 = vpop.f32.mrf.mxu0
        %v1243 = vadd.f32 0.0, %v1242
        %1244 = vmatmul.f32.gmra.mxu0 %v1205
        %v1245 = vpop.f32.mrf.mxu0
        %v1246 = vadd.f32 0.0, %v1245
        %1247 = vmatmul.f32.gmra.mxu0 %v1208
        %v1248 = vpop.f32.mrf.mxu0
        %v1249 = vadd.f32 0.0, %v1248
        %1250 = vmatmul.f32.gmra.mxu0 %v1211
        %v1251 = vpop.f32.mrf.mxu0
        %v1252 = vadd.f32 0.0, %v1251
        %1253 = vmatmul.f32.gmra.mxu0 %v1214
        %v1254 = vpop.f32.mrf.mxu0
        %v1255 = vadd.f32 0.0, %v1254
        %1256 = vmatmul.f32.gmra.mxu0 %v1217
        %v1257 = vpop.f32.mrf.mxu0
        %v1258 = vadd.f32 0.0, %v1257
        %1259 = vmatmul.f32.gmra.mxu0 %v1220
        %v1260 = vpop.f32.mrf.mxu0
        %v1261 = vadd.f32 0.0, %v1260
        %1262 = vdwg.mxu0
        %v1263 = vperm.slane %v427, 1
        %v1264 = vadd.f32 %v1263, %v1240
        %v1265 = vadd.f32 %v1263, %v1243
        %v1266 = vadd.f32 %v1263, %v1246
        %v1267 = vadd.f32 %v1263, %v1249
        %v1268 = vadd.f32 %v1263, %v1252
        %v1269 = vadd.f32 %v1263, %v1255
        %v1270 = vadd.f32 %v1263, %v1258
        %v1271 = vadd.f32 %v1263, %v1261
        %v1273 = vsel %vm567, %v1196, 0
        %1275 = vmatpush.msra.mxu0 0.0
        %1276 = vmatpush.msra.mxu0 0.0
        %1277 = vmatpush.msra.mxu0 0.0
        %1278 = vmatpush.msra.mxu0 0.0
        %1279 = vmatpush.msra.mxu0 0.0
        %1280 = vmatpush.msra.mxu0 0.0
        %1281 = vmatpush.msra.mxu0 0.0
        %1282 = vmatpush.msra.mxu0 0.0
        %1283 = vmatpush.msra.mxu0 0.0
        %1284 = vmatpush.msra.mxu0 0.0
        %1285 = vmatpush.msra.mxu0 0.0
        %1286 = vmatpush.msra.mxu0 0.0
        %1287 = vmatpush.msra.mxu0 %v1174
        %1288 = vmatpush.msra.mxu0 %v1173
        %1289 = vmatpush.msra.mxu0 %v1172
        %1290 = vmatpush.msra.mxu0 %v1171
        %1291 = vmatmul.f32.gmra.mxu0 %v1202
        %v1292 = vpop.f32.mrf.mxu0
        %v1293 = vadd.f32 0.0, %v1292
        %1294 = vmatmul.f32.gmra.mxu0 %v1205
        %v1295 = vpop.f32.mrf.mxu0
        %v1296 = vadd.f32 0.0, %v1295
        %1297 = vmatmul.f32.gmra.mxu0 %v1208
        %v1298 = vpop.f32.mrf.mxu0
        %v1299 = vadd.f32 0.0, %v1298
        %1300 = vmatmul.f32.gmra.mxu0 %v1211
        %v1301 = vpop.f32.mrf.mxu0
        %v1302 = vadd.f32 0.0, %v1301
        %1303 = vmatmul.f32.gmra.mxu0 %v1214
        %v1304 = vpop.f32.mrf.mxu0
        %v1305 = vadd.f32 0.0, %v1304
        %1306 = vmatmul.f32.gmra.mxu0 %v1217
        %v1307 = vpop.f32.mrf.mxu0
        %v1308 = vadd.f32 0.0, %v1307
        %1309 = vmatmul.f32.gmra.mxu0 %v1220
        %v1310 = vpop.f32.mrf.mxu0
        %v1311 = vadd.f32 0.0, %v1310
        %1312 = vmatmul.f32.gmra.mxu0 %v1273
        %v1313 = vpop.f32.mrf.mxu0
        %v1314 = vadd.f32 0.0, %v1313
        %1315 = vdwg.mxu0
        %v1316 = vadd.f32 %v1264, %v1293
        %v1317 = vadd.f32 %v1265, %v1296
        %v1318 = vadd.f32 %v1266, %v1299
        %v1319 = vadd.f32 %v1267, %v1302
        %v1320 = vadd.f32 %v1268, %v1305
        %v1321 = vadd.f32 %v1269, %v1308
        %v1322 = vadd.f32 %v1270, %v1311
        %v1323 = vadd.f32 %v1271, %v1314
        %v1325 = vsel %vm567, %v1197, 0
        %1327 = vmatpush.msra.mxu0 0.0
        %1328 = vmatpush.msra.mxu0 0.0
        %1329 = vmatpush.msra.mxu0 0.0
        %1330 = vmatpush.msra.mxu0 0.0
        %1331 = vmatpush.msra.mxu0 0.0
        %1332 = vmatpush.msra.mxu0 0.0
        %1333 = vmatpush.msra.mxu0 0.0
        %1334 = vmatpush.msra.mxu0 0.0
        %1335 = vmatpush.msra.mxu0 0.0
        %1336 = vmatpush.msra.mxu0 0.0
        %1337 = vmatpush.msra.mxu0 0.0
        %1338 = vmatpush.msra.mxu0 0.0
        %1339 = vmatpush.msra.mxu0 %v1178
        %1340 = vmatpush.msra.mxu0 %v1177
        %1341 = vmatpush.msra.mxu0 %v1176
        %1342 = vmatpush.msra.mxu0 %v1175
        %1343 = vmatmul.f32.gmra.mxu0 %v1205
        %v1344 = vpop.f32.mrf.mxu0
        %v1345 = vadd.f32 0.0, %v1344
        %1346 = vmatmul.f32.gmra.mxu0 %v1208
        %v1347 = vpop.f32.mrf.mxu0
        %v1348 = vadd.f32 0.0, %v1347
        %1349 = vmatmul.f32.gmra.mxu0 %v1211
        %v1350 = vpop.f32.mrf.mxu0
        %v1351 = vadd.f32 0.0, %v1350
        %1352 = vmatmul.f32.gmra.mxu0 %v1214
        %v1353 = vpop.f32.mrf.mxu0
        %v1354 = vadd.f32 0.0, %v1353
        %1355 = vmatmul.f32.gmra.mxu0 %v1217
        %v1356 = vpop.f32.mrf.mxu0
        %v1357 = vadd.f32 0.0, %v1356
        %1358 = vmatmul.f32.gmra.mxu0 %v1220
        %v1359 = vpop.f32.mrf.mxu0
        %v1360 = vadd.f32 0.0, %v1359
        %1361 = vmatmul.f32.gmra.mxu0 %v1273
        %v1362 = vpop.f32.mrf.mxu0
        %v1363 = vadd.f32 0.0, %v1362
        %1364 = vmatmul.f32.gmra.mxu0 %v1325
        %v1365 = vpop.f32.mrf.mxu0
        %v1366 = vadd.f32 0.0, %v1365
        %1367 = vdwg.mxu0
        %v1368 = vadd.f32 %v1316, %v1345
        %v1369 = vadd.f32 %v1317, %v1348
        %v1370 = vadd.f32 %v1318, %v1351
        %v1371 = vadd.f32 %v1319, %v1354
        %v1372 = vadd.f32 %v1320, %v1357
        %v1373 = vadd.f32 %v1321, %v1360
        %v1374 = vadd.f32 %v1322, %v1363
        %v1375 = vadd.f32 %v1323, %v1366
        %v1376 = vmax.f32 %v1368, 0.0
        %v1377 = vmax.f32 %v1369, 0.0
        %v1378 = vmax.f32 %v1370, 0.0
        %v1379 = vmax.f32 %v1371, 0.0
        %v1380 = vmax.f32 %v1372, 0.0
        %v1381 = vmax.f32 %v1373, 0.0
        %v1382 = vmax.f32 %v1374, 0.0
        %v1383 = vmax.f32 %v1375, 0.0
        %v1384 = vld [vmem:[%s6] sm:$0xff]
        %v1385 = vld [vmem:[%s6 + $0x8] sm:$0xff]
        %v1386 = vld [vmem:[%s6 + $0x10] sm:$0xff]
        %v1387 = vld [vmem:[%s6 + $0x18] sm:$0xff]
        %v1388 = vld [vmem:[%s6 + $0x20] sm:$0xff]
        %v1389 = vld [vmem:[%s6 + $0x28] sm:$0xff]
        %v1390 = vld [vmem:[%s6 + $0x30] sm:$0xff]
        %v1391 = vld [vmem:[%s6 + $0x38] sm:$0xff]
        %v1392 = vld [vmem:[%s6 + $0x40] sm:$0xff]
        %v1393 = vld [vmem:[%s6 + $0x48] sm:$0xff]
        %v1394 = vld [vmem:[%s6 + $0x50] sm:$0xff]
        %v1395 = vld [vmem:[%s6 + $0x58] sm:$0xff]
        %1396 = vst.msk [vmem:[%s1179] sm:$0xff] %vm567, %v1376
        %1397 = vst.msk [vmem:[%s1179 + $0x8] sm:$0xff] %vm567, %v1377
        %1398 = vst.msk [vmem:[%s1179 + $0x10] sm:$0xff] %vm567, %v1378
        %1399 = vst.msk [vmem:[%s1179 + $0x18] sm:$0xff] %vm567, %v1379
        %1400 = vst.msk [vmem:[%s1179 + $0x20] sm:$0xff] %vm567, %v1380
        %1401 = vst.msk [vmem:[%s1179 + $0x28] sm:$0xff] %vm567, %v1381
        %1402 = vst.msk [vmem:[%s1179 + $0x30] sm:$0xff] %vm567, %v1382
        %1403 = vst.msk [vmem:[%s1179 + $0x38] sm:$0xff] %vm567, %v1383
        %v1404 = vld [vmem:[#allocation2] sm:$0xff]
        %v1405 = vld [vmem:[#allocation2 + $0x8] sm:$0xff]
        %v1406 = vld [vmem:[#allocation2 + $0x10] sm:$0xff]
        %v1407 = vld [vmem:[#allocation2 + $0x18] sm:$0xff]
        %v1408 = vld [vmem:[#allocation2 + $0x20] sm:$0xff]
        %v1409 = vld [vmem:[#allocation2 + $0x28] sm:$0xff]
        %v1410 = vld [vmem:[#allocation2 + $0x30] sm:$0xff]
        %v1411 = vld [vmem:[#allocation2 + $0x38] sm:$0xff]
        %v1412 = vld [vmem:[#allocation2 + $0x40] sm:$0xff]
        %v1413 = vld [vmem:[#allocation2 + $0x48] sm:$0xff]
        %v1415 = vsel %vm567, %v1404, 0
        %v1418 = vsel %vm567, %v1405, 0
        %v1421 = vsel %vm567, %v1406, 0
        %v1424 = vsel %vm567, %v1407, 0
        %v1427 = vsel %vm567, %v1408, 0
        %v1430 = vsel %vm567, %v1409, 0
        %v1433 = vsel %vm567, %v1410, 0
        %v1436 = vsel %vm567, %v1411, 0
        %1438 = vmatpush.msra.mxu0 0.0
        %1439 = vmatpush.msra.mxu0 0.0
        %1440 = vmatpush.msra.mxu0 0.0
        %1441 = vmatpush.msra.mxu0 0.0
        %1442 = vmatpush.msra.mxu0 0.0
        %1443 = vmatpush.msra.mxu0 0.0
        %1444 = vmatpush.msra.mxu0 0.0
        %1445 = vmatpush.msra.mxu0 0.0
        %1446 = vmatpush.msra.mxu0 0.0
        %1447 = vmatpush.msra.mxu0 0.0
        %1448 = vmatpush.msra.mxu0 0.0
        %1449 = vmatpush.msra.mxu0 0.0
        %1450 = vmatpush.msra.mxu0 %v1387
        %1451 = vmatpush.msra.mxu0 %v1386
        %1452 = vmatpush.msra.mxu0 %v1385
        %1453 = vmatpush.msra.mxu0 %v1384
        %1454 = vmatmul.f32.gmra.mxu0 %v1415
        %v1455 = vpop.f32.mrf.mxu0
        %v1456 = vadd.f32 0.0, %v1455
        %1457 = vmatmul.f32.gmra.mxu0 %v1418
        %v1458 = vpop.f32.mrf.mxu0
        %v1459 = vadd.f32 0.0, %v1458
        %1460 = vmatmul.f32.gmra.mxu0 %v1421
        %v1461 = vpop.f32.mrf.mxu0
        %v1462 = vadd.f32 0.0, %v1461
        %1463 = vmatmul.f32.gmra.mxu0 %v1424
        %v1464 = vpop.f32.mrf.mxu0
        %v1465 = vadd.f32 0.0, %v1464
        %1466 = vmatmul.f32.gmra.mxu0 %v1427
        %v1467 = vpop.f32.mrf.mxu0
        %v1468 = vadd.f32 0.0, %v1467
        %1469 = vmatmul.f32.gmra.mxu0 %v1430
        %v1470 = vpop.f32.mrf.mxu0
        %v1471 = vadd.f32 0.0, %v1470
        %1472 = vmatmul.f32.gmra.mxu0 %v1433
        %v1473 = vpop.f32.mrf.mxu0
        %v1474 = vadd.f32 0.0, %v1473
        %1475 = vmatmul.f32.gmra.mxu0 %v1436
        %v1476 = vpop.f32.mrf.mxu0
        %v1477 = vadd.f32 0.0, %v1476
        %1478 = vdwg.mxu0
        %v1479 = vperm.slane %v427, 2
        %v1480 = vadd.f32 %v1479, %v1456
        %v1481 = vadd.f32 %v1479, %v1459
        %v1482 = vadd.f32 %v1479, %v1462
        %v1483 = vadd.f32 %v1479, %v1465
        %v1484 = vadd.f32 %v1479, %v1468
        %v1485 = vadd.f32 %v1479, %v1471
        %v1486 = vadd.f32 %v1479, %v1474
        %v1487 = vadd.f32 %v1479, %v1477
        %v1489 = vsel %vm567, %v1412, 0
        %1491 = vmatpush.msra.mxu0 0.0
        %1492 = vmatpush.msra.mxu0 0.0
        %1493 = vmatpush.msra.mxu0 0.0
        %1494 = vmatpush.msra.mxu0 0.0
        %1495 = vmatpush.msra.mxu0 0.0
        %1496 = vmatpush.msra.mxu0 0.0
        %1497 = vmatpush.msra.mxu0 0.0
        %1498 = vmatpush.msra.mxu0 0.0
        %1499 = vmatpush.msra.mxu0 0.0
        %1500 = vmatpush.msra.mxu0 0.0
        %1501 = vmatpush.msra.mxu0 0.0
        %1502 = vmatpush.msra.mxu0 0.0
        %1503 = vmatpush.msra.mxu0 %v1391
        %1504 = vmatpush.msra.mxu0 %v1390
        %1505 = vmatpush.msra.mxu0 %v1389
        %1506 = vmatpush.msra.mxu0 %v1388
        %1507 = vmatmul.f32.gmra.mxu0 %v1418
        %v1508 = vpop.f32.mrf.mxu0
        %v1509 = vadd.f32 0.0, %v1508
        %1510 = vmatmul.f32.gmra.mxu0 %v1421
        %v1511 = vpop.f32.mrf.mxu0
        %v1512 = vadd.f32 0.0, %v1511
        %1513 = vmatmul.f32.gmra.mxu0 %v1424
        %v1514 = vpop.f32.mrf.mxu0
        %v1515 = vadd.f32 0.0, %v1514
        %1516 = vmatmul.f32.gmra.mxu0 %v1427
        %v1517 = vpop.f32.mrf.mxu0
        %v1518 = vadd.f32 0.0, %v1517
        %1519 = vmatmul.f32.gmra.mxu0 %v1430
        %v1520 = vpop.f32.mrf.mxu0
        %v1521 = vadd.f32 0.0, %v1520
        %1522 = vmatmul.f32.gmra.mxu0 %v1433
        %v1523 = vpop.f32.mrf.mxu0
        %v1524 = vadd.f32 0.0, %v1523
        %1525 = vmatmul.f32.gmra.mxu0 %v1436
        %v1526 = vpop.f32.mrf.mxu0
        %v1527 = vadd.f32 0.0, %v1526
        %1528 = vmatmul.f32.gmra.mxu0 %v1489
        %v1529 = vpop.f32.mrf.mxu0
        %v1530 = vadd.f32 0.0, %v1529
        %1531 = vdwg.mxu0
        %v1532 = vadd.f32 %v1480, %v1509
        %v1533 = vadd.f32 %v1481, %v1512
        %v1534 = vadd.f32 %v1482, %v1515
        %v1535 = vadd.f32 %v1483, %v1518
        %v1536 = vadd.f32 %v1484, %v1521
        %v1537 = vadd.f32 %v1485, %v1524
        %v1538 = vadd.f32 %v1486, %v1527
        %v1539 = vadd.f32 %v1487, %v1530
        %v1541 = vsel %vm567, %v1413, 0
        %1543 = vmatpush.msra.mxu0 0.0
        %1544 = vmatpush.msra.mxu0 0.0
        %1545 = vmatpush.msra.mxu0 0.0
        %1546 = vmatpush.msra.mxu0 0.0
        %1547 = vmatpush.msra.mxu0 0.0
        %1548 = vmatpush.msra.mxu0 0.0
        %1549 = vmatpush.msra.mxu0 0.0
        %1550 = vmatpush.msra.mxu0 0.0
        %1551 = vmatpush.msra.mxu0 0.0
        %1552 = vmatpush.msra.mxu0 0.0
        %1553 = vmatpush.msra.mxu0 0.0
        %1554 = vmatpush.msra.mxu0 0.0
        %1555 = vmatpush.msra.mxu0 %v1395
        %1556 = vmatpush.msra.mxu0 %v1394
        %1557 = vmatpush.msra.mxu0 %v1393
        %1558 = vmatpush.msra.mxu0 %v1392
        %1559 = vmatmul.f32.gmra.mxu0 %v1421
        %v1560 = vpop.f32.mrf.mxu0
        %v1561 = vadd.f32 0.0, %v1560
        %1562 = vmatmul.f32.gmra.mxu0 %v1424
        %v1563 = vpop.f32.mrf.mxu0
        %v1564 = vadd.f32 0.0, %v1563
        %1565 = vmatmul.f32.gmra.mxu0 %v1427
        %v1566 = vpop.f32.mrf.mxu0
        %v1567 = vadd.f32 0.0, %v1566
        %1568 = vmatmul.f32.gmra.mxu0 %v1430
        %v1569 = vpop.f32.mrf.mxu0
        %v1570 = vadd.f32 0.0, %v1569
        %1571 = vmatmul.f32.gmra.mxu0 %v1433
        %v1572 = vpop.f32.mrf.mxu0
        %v1573 = vadd.f32 0.0, %v1572
        %1574 = vmatmul.f32.gmra.mxu0 %v1436
        %v1575 = vpop.f32.mrf.mxu0
        %v1576 = vadd.f32 0.0, %v1575
        %1577 = vmatmul.f32.gmra.mxu0 %v1489
        %v1578 = vpop.f32.mrf.mxu0
        %v1579 = vadd.f32 0.0, %v1578
        %1580 = vmatmul.f32.gmra.mxu0 %v1541
        %v1581 = vpop.f32.mrf.mxu0
        %v1582 = vadd.f32 0.0, %v1581
        %1583 = vdwg.mxu0
        %v1584 = vadd.f32 %v1532, %v1561
        %v1585 = vadd.f32 %v1533, %v1564
        %v1586 = vadd.f32 %v1534, %v1567
        %v1587 = vadd.f32 %v1535, %v1570
        %v1588 = vadd.f32 %v1536, %v1573
        %v1589 = vadd.f32 %v1537, %v1576
        %v1590 = vadd.f32 %v1538, %v1579
        %v1591 = vadd.f32 %v1539, %v1582
        %v1592 = vmax.f32 %v1584, 0.0
        %v1593 = vmax.f32 %v1585, 0.0
        %v1594 = vmax.f32 %v1586, 0.0
        %v1595 = vmax.f32 %v1587, 0.0
        %v1596 = vmax.f32 %v1588, 0.0
        %v1597 = vmax.f32 %v1589, 0.0
        %v1598 = vmax.f32 %v1590, 0.0
        %v1599 = vmax.f32 %v1591, 0.0
        %v1600 = vsel %vm567, %v1592, 0.0
        %v1601 = vsel %vm567, %v1593, 0.0
        %v1602 = vadd.f32 %v1600, %v1601
        %v1603 = vsel %vm567, %v1594, 0.0
        %v1604 = vadd.f32 %v1602, %v1603
        %v1605 = vsel %vm567, %v1595, 0.0
        %v1606 = vadd.f32 %v1604, %v1605
        %v1607 = vsel %vm567, %v1596, 0.0
        %v1608 = vadd.f32 %v1606, %v1607
        %v1609 = vsel %vm567, %v1597, 0.0
        %v1610 = vadd.f32 %v1608, %v1609
        %v1611 = vsel %vm567, %v1598, 0.0
        %v1612 = vadd.f32 %v1610, %v1611
        %v1613 = vsel %vm567, %v1599, 0.0
        %v1614 = vadd.f32 %v1612, %v1613
        %v1615 = vrcp.pop 8.0
        %v1616 = vmul.f32 8.0, %v1615
        %v1617 = vsub.f32 1.0, %v1616
        %v1618 = vmul.f32 %v1615, %v1617
        %v1619 = vadd.f32 %v1615, %v1618
        %vm1620 = vweird.f32 %v1615
        %v1621 = vsel %vm1620, %v1615, %v1619
        %v1622 = vmul.f32 %v1614, %v1621
        %v1623 = vsel %vm567, %v1622, 0.0
        %1624 = vadd.xlane.f32.xlu0 %v1623
        %v1625 = vpop.xlane.xlu0 %1624
        %v1626 = vrcp.pop 32.0
        %v1627 = vmul.f32 32.0, %v1626
        %v1628 = vsub.f32 1.0, %v1627
        %v1629 = vmul.f32 %v1626, %v1628
        %v1630 = vadd.f32 %v1626, %v1629
        %vm1631 = vweird.f32 %v1626
        %v1632 = vsel %vm1631, %v1626, %v1630
        %v1633 = vmul.f32 %v1625, %v1632
        %v1634 = vsub.f32 %v1622, %v1633
        %v1635 = vmul.f32 %v1634, %v1634
        %v1636 = vsel %vm567, %v1635, 0.0
        %1637 = vadd.xlane.f32.xlu0 %v1636
        %v1638 = vpop.xlane.xlu0 %1637
        %v1639 = vmul.f32 %v1638, %v1632
        %v1640 = vadd.f32 %v1639, 1e-05
        %v1641 = vrsqrt.pop %v1640
        %v1642 = vmul.f32 %v1641, %v1640
        %v1643 = vmul.f32 %v1642, %v1641
        %v1644 = vmul.f32 0.5, %v1643
        %v1645 = vsub.f32 1.5, %v1644
        %v1646 = vmul.f32 %v1641, %v1645
        %vm1647 = vweird.f32 %v1640
        %vm1648 = vweird.f32 %v1641
        %vm1649 = vmor %vm1647, %vm1648
        %v1650 = vsel %vm1649, %v1641, %v1646
        %v1651 = vmul.f32 %v1634, %v1650
        %v1652 = vperm.slane %v427, 3
        %v1653 = vmul.f32 %v1651, %v1652
        %v1654 = vperm.slane %v427, 4
        %v1655 = vadd.f32 %v1653, %v1654
        %v1656 = vld [vmem:[%s7] sm:$0xff]
        %v1657 = vld [vmem:[%s7 + $0x8] sm:$0xff]
        %v1658 = vld [vmem:[%s7 + $0x10] sm:$0xff]
        %v1659 = vld [vmem:[%s7 + $0x18] sm:$0xff]
        %v1660 = vld [vmem:[%s8] sm:$0x1]
        %v1662 = vperm.slane %v1660, 0
        %v1665 = vsel %vm567, %v1655, 0
        %1667 = vmatpush.msra.mxu0 0.0
        %1668 = vmatpush.msra.mxu0 0.0
        %1669 = vmatpush.msra.mxu0 0.0
        %1670 = vmatpush.msra.mxu0 0.0
        %1671 = vmatpush.msra.mxu0 0.0
        %1672 = vmatpush.msra.mxu0 0.0
        %1673 = vmatpush.msra.mxu0 0.0
        %1674 = vmatpush.msra.mxu0 0.0
        %1675 = vmatpush.msra.mxu0 0.0
        %1676 = vmatpush.msra.mxu0 0.0
        %1677 = vmatpush.msra.mxu0 0.0
        %1678 = vmatpush.msra.mxu0 0.0
        %1679 = vmatpush.msra.mxu0 %v1659
        %1680 = vmatpush.msra.mxu0 %v1658
        %1681 = vmatpush.msra.mxu0 %v1657
        %1682 = vmatpush.msra.mxu0 %v1656
        %1683 = vmatmul.f32.gmra.mxu0 %v1665
        %v1684 = vpop.f32.mrf.mxu0
        %v1685 = vadd.f32 %v1662, %v1684
        %1686 = vdwg.mxu0
        %1688 = vrot.lane.b32.xlu0 %v1685, 120
        %v1689 = vpop.permute.xlu0 %1688
        %1691 = vrot.lane.b32.xlu0 %v1685, 112
        %v1692 = vpop.permute.xlu0 %1691
        %1694 = vrot.lane.b32.xlu0 %v1685, 104
        %v1695 = vpop.permute.xlu0 %1694
        %v1697 = vrot.slane %v1692, 4
        %vm1698 = vcmask 1047556
        %v1699 = vsel %vm1698, %v1697, %v1685
        %v1700 = vrot.slane %v1685, 4
        %v1701 = vsel %vm1698, %v1692, %v1700
        %v1703 = vunpack.c.l.s4 1983009808
        %v1704 = vunpack.c.0.s8 %v1703
        %v1705 = vperm.slane %v1699, %v1704
        %v1707 = vunpack.c.l.s4 1983009808
        %v1708 = vunpack.c.0.s8 %v1707
        %v1709 = vperm.slane %v1701, %v1708
        %v1710 = vrot.slane %v1695, 4
        %v1711 = vsel %vm1698, %v1710, %v1689
        %v1712 = vrot.slane %v1689, 4
        %v1713 = vsel %vm1698, %v1695, %v1712
        %v1715 = vunpack.c.l.s4 1983009808
        %v1716 = vunpack.c.0.s8 %v1715
        %v1717 = vperm.slane %v1711, %v1716
        %v1719 = vunpack.c.l.s4 1983009808
        %v1720 = vunpack.c.0.s8 %v1719
        %v1721 = vperm.slane %v1713, %v1720
        %v1722 = vrot.slane %v1717, 4
        %v1723 = vsel %vm1698, %v1722, %v1705
        %v1724 = vrot.slane %v1705, 4
        %v1725 = vsel %vm1698, %v1717, %v1724
        %v1727 = vunpack.c.l.s4 1934713408
        %v1728 = vunpack.c.0.s8 %v1727
        %v1729 = vperm.slane %v1723, %v1728
        %v1731 = vunpack.c.l.s4 1934713408
        %v1732 = vunpack.c.0.s8 %v1731
        %v1733 = vperm.slane %v1725, %v1732
        %v1734 = vrot.slane %v1721, 4
        %v1735 = vsel %vm1698, %v1734, %v1709
        %v1736 = vrot.slane %v1709, 4
        %v1737 = vsel %vm1698, %v1721, %v1736
        %v1739 = vunpack.c.l.s4 1934713408
        %v1740 = vunpack.c.0.s8 %v1739
        %v1741 = vperm.slane %v1735, %v1740
        %v1743 = vunpack.c.l.s4 1934713408
        %v1744 = vunpack.c.0.s8 %v1743
        %v1745 = vperm.slane %v1737, %v1744
        %v1746 = vrot.slane %v1729, 4
        %v1747 = vsel %vm1698, 0.0, %v1746
        %v1748 = vrot.slane %v1733, 4
        %v1749 = vsel %vm1698, 0.0, %v1748
        %v1750 = vrot.slane %v1741, 4
        %v1751 = vsel %vm1698, 0.0, %v1750
        %v1752 = vrot.slane %v1745, 4
        %v1753 = vsel %vm1698, 0.0, %v1752
        %v1754 = vsel %vm1698, %v1748, %v1729
        %v1756 = vunpack.c.l.s4 1983009808
        %v1757 = vunpack.c.0.s8 %v1756
        %v1758 = vperm.slane %v1754, %v1757
        %v1759 = vrot.slane %v1749, 4
        %v1760 = vsel %vm1698, %v1759, %v1747
        %v1762 = vunpack.c.l.s4 1983009808
        %v1763 = vunpack.c.0.s8 %v1762
        %v1764 = vperm.slane %v1760, %v1763
        %v1765 = vsel %vm1698, %v1752, %v1741
        %v1767 = vunpack.c.l.s4 1983009808
        %v1768 = vunpack.c.0.s8 %v1767
        %v1769 = vperm.slane %v1765, %v1768
        %v1770 = vrot.slane %v1753, 4
        %v1771 = vsel %vm1698, %v1770, %v1751
        %v1773 = vunpack.c.l.s4 1983009808
        %v1774 = vunpack.c.0.s8 %v1773
        %v1775 = vperm.slane %v1771, %v1774
        %v1776 = vrot.slane %v1764, 4
        %v1777 = vsel %vm1698, %v1776, %v1758
        %v1778 = vrot.slane %v1758, 4
        %v1779 = vsel %vm1698, %v1764, %v1778
        %v1781 = vunpack.c.l.s4 1934713408
        %v1782 = vunpack.c.0.s8 %v1781
        %v1783 = vperm.slane %v1777, %v1782
        %v1785 = vunpack.c.l.s4 1934713408
        %v1786 = vunpack.c.0.s8 %v1785
        %v1787 = vperm.slane %v1779, %v1786
        %v1788 = vrot.slane %v1775, 4
        %v1789 = vsel %vm1698, %v1788, %v1769
        %v1790 = vrot.slane %v1769, 4
        %v1791 = vsel %vm1698, %v1775, %v1790
        %v1793 = vunpack.c.l.s4 1934713408
        %v1794 = vunpack.c.0.s8 %v1793
        %v1795 = vperm.slane %v1789, %v1794
        %v1797 = vunpack.c.l.s4 1934713408
        %v1798 = vunpack.c.0.s8 %v1797
        %v1799 = vperm.slane %v1791, %v1798
        %v1800 = vrot.slane %v1795, 4
        %v1801 = vsel %vm1698, %v1800, %v1783
        %v1802 = vrot.slane %v1783, 4
        %v1803 = vsel %vm1698, %v1795, %v1802
        %v1804 = vrot.slane %v1799, 4
        %v1805 = vsel %vm1698, %v1804, %v1787
        %v1806 = vrot.slane %v1787, 4
        %v1807 = vsel %vm1698, %v1799, %v1806
        %1808 = vrot.lane.b32.xlu0 %v1685, 96
        %v1809 = vpop.permute.xlu0 %1808
        %1810 = vrot.lane.b32.xlu0 %v1689, 96
        %v1811 = vpop.permute.xlu0 %1810
        %1812 = vrot.lane.b32.xlu0 %v1692, 96
        %v1813 = vpop.permute.xlu0 %1812
        %1814 = vrot.lane.b32.xlu0 %v1695, 96
        %v1815 = vpop.permute.xlu0 %1814
        %v1820 = vrot.slane %v1813, 4
        %v1821 = vsel %vm1698, %v1820, %v1809
        %v1822 = vrot.slane %v1809, 4
        %v1823 = vsel %vm1698, %v1813, %v1822
        %v1825 = vunpack.c.l.s4 1983009808
        %v1826 = vunpack.c.0.s8 %v1825
        %v1827 = vperm.slane %v1821, %v1826
        %v1829 = vunpack.c.l.s4 1983009808
        %v1830 = vunpack.c.0.s8 %v1829
        %v1831 = vperm.slane %v1823, %v1830
        %v1832 = vrot.slane %v1815, 4
        %v1833 = vsel %vm1698, %v1832, %v1811
        %v1834 = vrot.slane %v1811, 4
        %v1835 = vsel %vm1698, %v1815, %v1834
        %v1837 = vunpack.c.l.s4 1983009808
        %v1838 = vunpack.c.0.s8 %v1837
        %v1839 = vperm.slane %v1833, %v1838
        %v1841 = vunpack.c.l.s4 1983009808
        %v1842 = vunpack.c.0.s8 %v1841
        %v1843 = vperm.slane %v1835, %v1842
        %v1844 = vrot.slane %v1839, 4
        %v1845 = vsel %vm1698, %v1844, %v1827
        %v1846 = vrot.slane %v1827, 4
        %v1847 = vsel %vm1698, %v1839, %v1846
        %v1849 = vunpack.c.l.s4 1934713408
        %v1850 = vunpack.c.0.s8 %v1849
        %v1851 = vperm.slane %v1845, %v1850
        %v1853 = vunpack.c.l.s4 1934713408
        %v1854 = vunpack.c.0.s8 %v1853
        %v1855 = vperm.slane %v1847, %v1854
        %v1856 = vrot.slane %v1843, 4
        %v1857 = vsel %vm1698, %v1856, %v1831
        %v1858 = vrot.slane %v1831, 4
        %v1859 = vsel %vm1698, %v1843, %v1858
        %v1861 = vunpack.c.l.s4 1934713408
        %v1862 = vunpack.c.0.s8 %v1861
        %v1863 = vperm.slane %v1857, %v1862
        %v1865 = vunpack.c.l.s4 1934713408
        %v1866 = vunpack.c.0.s8 %v1865
        %v1867 = vperm.slane %v1859, %v1866
        %v1868 = vrot.slane %v1851, 4
        %v1869 = vsel %vm1698, 0.0, %v1868
        %v1870 = vrot.slane %v1855, 4
        %v1871 = vsel %vm1698, 0.0, %v1870
        %v1872 = vrot.slane %v1863, 4
        %v1873 = vsel %vm1698, 0.0, %v1872
        %v1874 = vrot.slane %v1867, 4
        %v1875 = vsel %vm1698, 0.0, %v1874
        %v1876 = vsel %vm1698, %v1870, %v1851
        %v1878 = vunpack.c.l.s4 1983009808
        %v1879 = vunpack.c.0.s8 %v1878
        %v1880 = vperm.slane %v1876, %v1879
        %v1881 = vrot.slane %v1871, 4
        %v1882 = vsel %vm1698, %v1881, %v1869
        %v1884 = vunpack.c.l.s4 1983009808
        %v1885 = vunpack.c.0.s8 %v1884
        %v1886 = vperm.slane %v1882, %v1885
        %v1887 = vsel %vm1698, %v1874, %v1863
        %v1889 = vunpack.c.l.s4 1983009808
        %v1890 = vunpack.c.0.s8 %v1889
        %v1891 = vperm.slane %v1887, %v1890
        %v1892 = vrot.slane %v1875, 4
        %v1893 = vsel %vm1698, %v1892, %v1873
        %v1895 = vunpack.c.l.s4 1983009808
        %v1896 = vunpack.c.0.s8 %v1895
        %v1897 = vperm.slane %v1893, %v1896
        %v1898 = vrot.slane %v1886, 4
        %v1899 = vsel %vm1698, %v1898, %v1880
        %v1900 = vrot.slane %v1880, 4
        %v1901 = vsel %vm1698, %v1886, %v1900
        %v1903 = vunpack.c.l.s4 1934713408
        %v1904 = vunpack.c.0.s8 %v1903
        %v1905 = vperm.slane %v1899, %v1904
        %v1907 = vunpack.c.l.s4 1934713408
        %v1908 = vunpack.c.0.s8 %v1907
        %v1909 = vperm.slane %v1901, %v1908
        %v1910 = vrot.slane %v1897, 4
        %v1911 = vsel %vm1698, %v1910, %v1891
        %v1912 = vrot.slane %v1891, 4
        %v1913 = vsel %vm1698, %v1897, %v1912
        %v1915 = vunpack.c.l.s4 1934713408
        %v1916 = vunpack.c.0.s8 %v1915
        %v1917 = vperm.slane %v1911, %v1916
        %v1919 = vunpack.c.l.s4 1934713408
        %v1920 = vunpack.c.0.s8 %v1919
        %v1921 = vperm.slane %v1913, %v1920
        %v1922 = vrot.slane %v1917, 4
        %v1923 = vsel %vm1698, %v1922, %v1905
        %v1924 = vrot.slane %v1905, 4
        %v1925 = vsel %vm1698, %v1917, %v1924
        %v1926 = vrot.slane %v1921, 4
        %v1927 = vsel %vm1698, %v1926, %v1909
        %v1928 = vrot.slane %v1909, 4
        %v1929 = vsel %vm1698, %v1921, %v1928
        %1930 = vrot.lane.b32.xlu0 %v1685, 64
        %v1931 = vpop.permute.xlu0 %1930
        %1932 = vrot.lane.b32.xlu0 %v1689, 64
        %v1933 = vpop.permute.xlu0 %1932
        %1934 = vrot.lane.b32.xlu0 %v1692, 64
        %v1935 = vpop.permute.xlu0 %1934
        %1936 = vrot.lane.b32.xlu0 %v1695, 64
        %v1937 = vpop.permute.xlu0 %1936
        %v1942 = vrot.slane %v1935, 4
        %v1943 = vsel %vm1698, %v1942, %v1931
        %v1944 = vrot.slane %v1931, 4
        %v1945 = vsel %vm1698, %v1935, %v1944
        %v1947 = vunpack.c.l.s4 1983009808
        %v1948 = vunpack.c.0.s8 %v1947
        %v1949 = vperm.slane %v1943, %v1948
        %v1951 = vunpack.c.l.s4 1983009808
        %v1952 = vunpack.c.0.s8 %v1951
        %v1953 = vperm.slane %v1945, %v1952
        %v1954 = vrot.slane %v1937, 4
        %v1955 = vsel %vm1698, %v1954, %v1933
        %v1956 = vrot.slane %v1933, 4
        %v1957 = vsel %vm1698, %v1937, %v1956
        %v1959 = vunpack.c.l.s4 1983009808
        %v1960 = vunpack.c.0.s8 %v1959
        %v1961 = vperm.slane %v1955, %v1960
        %v1963 = vunpack.c.l.s4 1983009808
        %v1964 = vunpack.c.0.s8 %v1963
        %v1965 = vperm.slane %v1957, %v1964
        %v1966 = vrot.slane %v1961, 4
        %v1967 = vsel %vm1698, %v1966, %v1949
        %v1968 = vrot.slane %v1949, 4
        %v1969 = vsel %vm1698, %v1961, %v1968
        %v1971 = vunpack.c.l.s4 1934713408
        %v1972 = vunpack.c.0.s8 %v1971
        %v1973 = vperm.slane %v1967, %v1972
        %v1975 = vunpack.c.l.s4 1934713408
        %v1976 = vunpack.c.0.s8 %v1975
        %v1977 = vperm.slane %v1969, %v1976
        %v1978 = vrot.slane %v1965, 4
        %v1979 = vsel %vm1698, %v1978, %v1953
        %v1980 = vrot.slane %v1953, 4
        %v1981 = vsel %vm1698, %v1965, %v1980
        %v1983 = vunpack.c.l.s4 1934713408
        %v1984 = vunpack.c.0.s8 %v1983
        %v1985 = vperm.slane %v1979, %v1984
        %v1987 = vunpack.c.l.s4 1934713408
        %v1988 = vunpack.c.0.s8 %v1987
        %v1989 = vperm.slane %v1981, %v1988
        %v1990 = vrot.slane %v1973, 4
        %v1991 = vsel %vm1698, 0.0, %v1990
        %v1992 = vrot.slane %v1977, 4
        %v1993 = vsel %vm1698, 0.0, %v1992
        %v1994 = vrot.slane %v1985, 4
        %v1995 = vsel %vm1698, 0.0, %v1994
        %v1996 = vrot.slane %v1989, 4
        %v1997 = vsel %vm1698, 0.0, %v1996
        %v1998 = vsel %vm1698, %v1992, %v1973
        %v2000 = vunpack.c.l.s4 1983009808
        %v2001 = vunpack.c.0.s8 %v2000
        %v2002 = vperm.slane %v1998, %v2001
        %v2003 = vrot.slane %v1993, 4
        %v2004 = vsel %vm1698, %v2003, %v1991
        %v2006 = vunpack.c.l.s4 1983009808
        %v2007 = vunpack.c.0.s8 %v2006
        %v2008 = vperm.slane %v2004, %v2007
        %v2009 = vsel %vm1698, %v1996, %v1985
        %v2011 = vunpack.c.l.s4 1983009808
        %v2012 = vunpack.c.0.s8 %v2011
        %v2013 = vperm.slane %v2009, %v2012
        %v2014 = vrot.slane %v1997, 4
        %v2015 = vsel %vm1698, %v2014, %v1995
        %v2017 = vunpack.c.l.s4 1983009808
        %v2018 = vunpack.c.0.s8 %v2017
        %v2019 = vperm.slane %v2015, %v2018
        %v2020 = vrot.slane %v2008, 4
        %v2021 = vsel %vm1698, %v2020, %v2002
        %v2022 = vrot.slane %v2002, 4
        %v2023 = vsel %vm1698, %v2008, %v2022
        %v2025 = vunpack.c.l.s4 1934713408
        %v2026 = vunpack.c.0.s8 %v2025
        %v2027 = vperm.slane %v2021, %v2026
        %v2029 = vunpack.c.l.s4 1934713408
        %v2030 = vunpack.c.0.s8 %v2029
        %v2031 = vperm.slane %v2023, %v2030
        %v2032 = vrot.slane %v2019, 4
        %v2033 = vsel %vm1698, %v2032, %v2013
        %v2034 = vrot.slane %v2013, 4
        %v2035 = vsel %vm1698, %v2019, %v2034
        %v2037 = vunpack.c.l.s4 1934713408
        %v2038 = vunpack.c.0.s8 %v2037
        %v2039 = vperm.slane %v2033, %v2038
        %v2041 = vunpack.c.l.s4 1934713408
        %v2042 = vunpack.c.0.s8 %v2041
        %v2043 = vperm.slane %v2035, %v2042
        %v2044 = vrot.slane %v2039, 4
        %v2045 = vsel %vm1698, %v2044, %v2027
        %v2046 = vrot.slane %v2027, 4
        %v2047 = vsel %vm1698, %v2039, %v2046
        %v2048 = vrot.slane %v2043, 4
        %v2049 = vsel %vm1698, %v2048, %v2031
        %v2050 = vrot.slane %v2031, 4
        %v2051 = vsel %vm1698, %v2043, %v2050
        %vm2052 = vcmask 64512
        %v2054 = vsel %vm2052, %v1801, 0
        %v2057 = vsel %vm2052, %v1923, 0
        %2059 = vmatpush.xpose.msra.mxu0 0.0
        %2060 = vmatpush.xpose.msra.mxu0 0.0
        %2061 = vmatpush.xpose.msra.mxu0 0.0
        %2062 = vmatpush.xpose.msra.mxu0 0.0
        %2063 = vmatpush.xpose.msra.mxu0 0.0
        %2064 = vmatpush.xpose.msra.mxu0 0.0
        %2065 = vmatpush.xpose.msra.mxu0 0.0
        %2066 = vmatpush.xpose.msra.mxu0 0.0
        %2067 = vmatpush.xpose.msra.mxu0 0.0
        %2068 = vmatpush.xpose.msra.mxu0 0.0
        %2069 = vmatpush.xpose.msra.mxu0 0.0
        %2070 = vmatpush.xpose.msra.mxu0 0.0
        %2071 = vmatpush.xpose.msra.mxu0 0.0
        %2072 = vmatpush.xpose.msra.mxu0 0.0
        %2073 = vmatpush.xpose.msra.mxu0 0.0
        %2074 = vmatpush.xpose.msra.mxu0 %v2057
        %2075 = vmatmul.f32.gmra.mxu0 %v2054
        %v2076 = vpop.f32.mrf.mxu0
        %v2077 = vadd.f32 0.0, %v2076
        %2078 = vdwg.mxu0
        %v2080 = vsel %vm2052, %v1803, 0
        %v2083 = vsel %vm2052, %v1925, 0
        %2085 = vmatpush.xpose.msra.mxu0 0.0
        %2086 = vmatpush.xpose.msra.mxu0 0.0
        %2087 = vmatpush.xpose.msra.mxu0 0.0
        %2088 = vmatpush.xpose.msra.mxu0 0.0
        %2089 = vmatpush.xpose.msra.mxu0 0.0
        %2090 = vmatpush.xpose.msra.mxu0 0.0
        %2091 = vmatpush.xpose.msra.mxu0 0.0
        %2092 = vmatpush.xpose.msra.mxu0 0.0
        %2093 = vmatpush.xpose.msra.mxu0 0.0
        %2094 = vmatpush.xpose.msra.mxu0 0.0
        %2095 = vmatpush.xpose.msra.mxu0 0.0
        %2096 = vmatpush.xpose.msra.mxu0 0.0
        %2097 = vmatpush.xpose.msra.mxu0 0.0
        %2098 = vmatpush.xpose.msra.mxu0 0.0
        %2099 = vmatpush.xpose.msra.mxu0 0.0
        %2100 = vmatpush.xpose.msra.mxu0 %v2083
        %2101 = vmatmul.f32.gmra.mxu0 %v2080
        %v2102 = vpop.f32.mrf.mxu0
        %v2103 = vadd.f32 0.0, %v2102
        %2104 = vdwg.mxu0
        %v2106 = vsel %vm2052, %v1805, 0
        %v2109 = vsel %vm2052, %v1927, 0
        %2111 = vmatpush.xpose.msra.mxu0 0.0
        %2112 = vmatpush.xpose.msra.mxu0 0.0
        %2113 = vmatpush.xpose.msra.mxu0 0.0
        %2114 = vmatpush.xpose.msra.mxu0 0.0
        %2115 = vmatpush.xpose.msra.mxu0 0.0
        %2116 = vmatpush.xpose.msra.mxu0 0.0
        %2117 = vmatpush.xpose.msra.mxu0 0.0
        %2118 = vmatpush.xpose.msra.mxu0 0.0
        %2119 = vmatpush.xpose.msra.mxu0 0.0
        %2120 = vmatpush.xpose.msra.mxu0 0.0
        %2121 = vmatpush.xpose.msra.mxu0 0.0
        %2122 = vmatpush.xpose.msra.mxu0 0.0
        %2123 = vmatpush.xpose.msra.mxu0 0.0
        %2124 = vmatpush.xpose.msra.mxu0 0.0
        %2125 = vmatpush.xpose.msra.mxu0 0.0
        %2126 = vmatpush.xpose.msra.mxu0 %v2109
        %2127 = vmatmul.f32.gmra.mxu0 %v2106
        %v2128 = vpop.f32.mrf.mxu0
        %v2129 = vadd.f32 0.0, %v2128
        %2130 = vdwg.mxu0
        %v2132 = vsel %vm2052, %v1807, 0
        %v2135 = vsel %vm2052, %v1929, 0
        %2137 = vmatpush.xpose.msra.mxu0 0.0
        %2138 = vmatpush.xpose.msra.mxu0 0.0
        %2139 = vmatpush.xpose.msra.mxu0 0.0
        %2140 = vmatpush.xpose.msra.mxu0 0.0
        %2141 = vmatpush.xpose.msra.mxu0 0.0
        %2142 = vmatpush.xpose.msra.mxu0 0.0
        %2143 = vmatpush.xpose.msra.mxu0 0.0
        %2144 = vmatpush.xpose.msra.mxu0 0.0
        %2145 = vmatpush.xpose.msra.mxu0 0.0
        %2146 = vmatpush.xpose.msra.mxu0 0.0
        %2147 = vmatpush.xpose.msra.mxu0 0.0
        %2148 = vmatpush.xpose.msra.mxu0 0.0
        %2149 = vmatpush.xpose.msra.mxu0 0.0
        %2150 = vmatpush.xpose.msra.mxu0 0.0
        %2151 = vmatpush.xpose.msra.mxu0 0.0
        %2152 = vmatpush.xpose.msra.mxu0 %v2135
        %2153 = vmatmul.f32.gmra.mxu0 %v2132
        %v2154 = vpop.f32.mrf.mxu0
        %v2155 = vadd.f32 0.0, %v2154
        %2156 = vdwg.mxu0
        %v2157 = vmul.f32 %v2077, 0.35355338
        %v2158 = vmul.f32 %v2103, 0.35355338
        %v2159 = vmul.f32 %v2129, 0.35355338
        %v2160 = vmul.f32 %v2155, 0.35355338
        %v2161 = vsel %vm2052, %v2157, -inf
        %2162 = vmax.xlane.f32.xlu0 %v2161
        %v2163 = vpop.xlane.xlu0 %2162
        %v2164 = vsel %vm2052, %v2158, -inf
        %2165 = vmax.xlane.f32.xlu0 %v2164
        %v2166 = vpop.xlane.xlu0 %2165
        %v2167 = vsel %vm2052, %v2159, -inf
        %2168 = vmax.xlane.f32.xlu0 %v2167
        %v2169 = vpop.xlane.xlu0 %2168
        %v2170 = vsel %vm2052, %v2160, -inf
        %2171 = vmax.xlane.f32.xlu0 %v2170
        %v2172 = vpop.xlane.xlu0 %2171
        %v2173 = vsub.f32 %v2157, %v2163
        %v2174 = vsub.f32 %v2158, %v2166
        %v2175 = vsub.f32 %v2159, %v2169
        %v2176 = vsub.f32 %v2160, %v2172
        %v2177 = vmul.f32 %v2173, 1.442695
        %v2178 = vpow.pop %v2177
        %v2179 = vmul.f32 %v2174, 1.442695
        %v2180 = vpow.pop %v2179
        %v2181 = vmul.f32 %v2175, 1.442695
        %v2182 = vpow.pop %v2181
        %v2183 = vmul.f32 %v2176, 1.442695
        %v2184 = vpow.pop %v2183
        %v2185 = vsel %vm2052, %v2178, 0.0
        %2186 = vadd.xlane.f32.xlu0 %v2185
        %v2187 = vpop.xlane.xlu0 %2186
        %v2188 = vsel %vm2052, %v2180, 0.0
        %2189 = vadd.xlane.f32.xlu0 %v2188
        %v2190 = vpop.xlane.xlu0 %2189
        %v2191 = vsel %vm2052, %v2182, 0.0
        %2192 = vadd.xlane.f32.xlu0 %v2191
        %v2193 = vpop.xlane.xlu0 %2192
        %v2194 = vsel %vm2052, %v2184, 0.0
        %2195 = vadd.xlane.f32.xlu0 %v2194
        %v2196 = vpop.xlane.xlu0 %2195
        %v2197 = vrcp.pop %v2187
        %v2198 = vmul.f32 %v2187, %v2197
        %v2199 = vsub.f32 1.0, %v2198
        %v2200 = vmul.f32 %v2197, %v2199
        %v2201 = vadd.f32 %v2197, %v2200
        %vm2202 = vweird.f32 %v2187
        %vm2203 = vweird.f32 %v2197
        %vm2204 = vmor %vm2202, %vm2203
        %v2205 = vsel %vm2204, %v2197, %v2201
        %v2206 = vand.u32 2147483647, %v2187
        %vm2207 = vcmp.eq.f32.partialorder %v2206, 8.507059e+37
        %v2208 = vand.u32 %v2187, 2147483648
        %v2209 = vor.u32 1.1754944e-38, %v2208
        %v2210 = vsel %vm2207, %v2209, %v2205
        %v2211 = vmul.f32 %v2178, %v2210
        %v2212 = vrcp.pop %v2190
        %v2213 = vmul.f32 %v2190, %v2212
        %v2214 = vsub.f32 1.0, %v2213
        %v2215 = vmul.f32 %v2212, %v2214
        %v2216 = vadd.f32 %v2212, %v2215
        %vm2217 = vweird.f32 %v2190
        %vm2218 = vweird.f32 %v2212
        %vm2219 = vmor %vm2217, %vm2218
        %v2220 = vsel %vm2219, %v2212, %v2216
        %v2221 = vand.u32 2147483647, %v2190
        %vm2222 = vcmp.eq.f32.partialorder %v2221, 8.507059e+37
        %v2223 = vand.u32 %v2190, 2147483648
        %v2224 = vor.u32 1.1754944e-38, %v2223
        %v2225 = vsel %vm2222, %v2224, %v2220
        %v2226 = vmul.f32 %v2180, %v2225
        %v2227 = vrcp.pop %v2193
        %v2228 = vmul.f32 %v2193, %v2227
        %v2229 = vsub.f32 1.0, %v2228
        %v2230 = vmul.f32 %v2227, %v2229
        %v2231 = vadd.f32 %v2227, %v2230
        %vm2232 = vweird.f32 %v2193
        %vm2233 = vweird.f32 %v2227
        %vm2234 = vmor %vm2232, %vm2233
        %v2235 = vsel %vm2234, %v2227, %v2231
        %v2236 = vand.u32 2147483647, %v2193
        %vm2237 = vcmp.eq.f32.partialorder %v2236, 8.507059e+37
        %v2238 = vand.u32 %v2193, 2147483648
        %v2239 = vor.u32 1.1754944e-38, %v2238
        %v2240 = vsel %vm2237, %v2239, %v2235
        %v2241 = vmul.f32 %v2182, %v2240
        %v2242 = vrcp.pop %v2196
        %v2243 = vmul.f32 %v2196, %v2242
        %v2244 = vsub.f32 1.0, %v2243
        %v2245 = vmul.f32 %v2242, %v2244
        %v2246 = vadd.f32 %v2242, %v2245
        %vm2247 = vweird.f32 %v2196
        %vm2248 = vweird.f32 %v2242
        %vm2249 = vmor %vm2247, %vm2248
        %v2250 = vsel %vm2249, %v2242, %v2246
        %v2251 = vand.u32 2147483647, %v2196
        %vm2252 = vcmp.eq.f32.partialorder %v2251, 8.507059e+37
        %v2253 = vand.u32 %v2196, 2147483648
        %v2254 = vor.u32 1.1754944e-38, %v2253
        %v2255 = vsel %vm2252, %v2254, %v2250
        %v2256 = vmul.f32 %v2184, %v2255
        %v2258 = vsel %vm2052, %v2211, 0
        %2260 = vmatpush.msra.mxu0 0.0
        %2261 = vmatpush.msra.mxu0 0.0
        %2262 = vmatpush.msra.mxu0 0.0
        %2263 = vmatpush.msra.mxu0 0.0
        %2264 = vmatpush.msra.mxu0 0.0
        %2265 = vmatpush.msra.mxu0 0.0
        %2266 = vmatpush.msra.mxu0 0.0
        %2267 = vmatpush.msra.mxu0 0.0
        %2268 = vmatpush.msra.mxu0 0.0
        %2269 = vmatpush.msra.mxu0 0.0
        %2270 = vmatpush.msra.mxu0 0.0
        %2271 = vmatpush.msra.mxu0 0.0
        %2272 = vmatpush.msra.mxu0 0.0
        %2273 = vmatpush.msra.mxu0 0.0
        %2274 = vmatpush.msra.mxu0 0.0
        %2275 = vmatpush.msra.mxu0 %v2045
        %2276 = vmatmul.f32.gmra.mxu0 %v2258
        %v2277 = vpop.f32.mrf.mxu0
        %v2278 = vadd.f32 0.0, %v2277
        %2279 = vdwg.mxu0
        %v2281 = vsel %vm2052, %v2226, 0
        %2283 = vmatpush.msra.mxu0 0.0
        %2284 = vmatpush.msra.mxu0 0.0
        %2285 = vmatpush.msra.mxu0 0.0
        %2286 = vmatpush.msra.mxu0 0.0
        %2287 = vmatpush.msra.mxu0 0.0
        %2288 = vmatpush.msra.mxu0 0.0
        %2289 = vmatpush.msra.mxu0 0.0
        %2290 = vmatpush.msra.mxu0 0.0
        %2291 = vmatpush.msra.mxu0 0.0
        %2292 = vmatpush.msra.mxu0 0.0
        %2293 = vmatpush.msra.mxu0 0.0
        %2294 = vmatpush.msra.mxu0 0.0
        %2295 = vmatpush.msra.mxu0 0.0
        %2296 = vmatpush.msra.mxu0 0.0
        %2297 = vmatpush.msra.mxu0 0.0
        %2298 = vmatpush.msra.mxu0 %v2047
        %2299 = vmatmul.f32.gmra.mxu0 %v2281
        %v2300 = vpop.f32.mrf.mxu0
        %v2301 = vadd.f32 0.0, %v2300
        %2302 = vdwg.mxu0
        %v2304 = vsel %vm2052, %v2241, 0
        %2306 = vmatpush.msra.mxu0 0.0
        %2307 = vmatpush.msra.mxu0 0.0
        %2308 = vmatpush.msra.mxu0 0.0
        %2309 = vmatpush.msra.mxu0 0.0
        %2310 = vmatpush.msra.mxu0 0.0
        %2311 = vmatpush.msra.mxu0 0.0
        %2312 = vmatpush.msra.mxu0 0.0
        %2313 = vmatpush.msra.mxu0 0.0
        %2314 = vmatpush.msra.mxu0 0.0
        %2315 = vmatpush.msra.mxu0 0.0
        %2316 = vmatpush.msra.mxu0 0.0
        %2317 = vmatpush.msra.mxu0 0.0
        %2318 = vmatpush.msra.mxu0 0.0
        %2319 = vmatpush.msra.mxu0 0.0
        %2320 = vmatpush.msra.mxu0 0.0
        %2321 = vmatpush.msra.mxu0 %v2049
        %2322 = vmatmul.f32.gmra.mxu0 %v2304
        %v2323 = vpop.f32.mrf.mxu0
        %v2324 = vadd.f32 0.0, %v2323
        %2325 = vdwg.mxu0
        %v2327 = vsel %vm2052, %v2256, 0
        %2329 = vmatpush.msra.mxu0 0.0
        %2330 = vmatpush.msra.mxu0 0.0
        %2331 = vmatpush.msra.mxu0 0.0
        %2332 = vmatpush.msra.mxu0 0.0
        %2333 = vmatpush.msra.mxu0 0.0
        %2334 = vmatpush.msra.mxu0 0.0
        %2335 = vmatpush.msra.mxu0 0.0
        %2336 = vmatpush.msra.mxu0 0.0
        %2337 = vmatpush.msra.mxu0 0.0
        %2338 = vmatpush.msra.mxu0 0.0
        %2339 = vmatpush.msra.mxu0 0.0
        %2340 = vmatpush.msra.mxu0 0.0
        %2341 = vmatpush.msra.mxu0 0.0
        %2342 = vmatpush.msra.mxu0 0.0
        %2343 = vmatpush.msra.mxu0 0.0
        %2344 = vmatpush.msra.mxu0 %v2051
        %2345 = vmatmul.f32.gmra.mxu0 %v2327
        %v2346 = vpop.f32.mrf.mxu0
        %v2347 = vadd.f32 0.0, %v2346
        %2348 = vdwg.mxu0
        %v2349 = vrot.slane %v2324, 4
        %v2350 = vsel %vm1698, %v2349, %v2278
        %v2351 = vrot.slane %v2278, 4
        %v2352 = vsel %vm1698, %v2324, %v2351
        %v2354 = vunpack.c.l.s4 1983009808
        %v2355 = vunpack.c.0.s8 %v2354
        %v2356 = vperm.slane %v2350, %v2355
        %v2358 = vunpack.c.l.s4 1983009808
        %v2359 = vunpack.c.0.s8 %v2358
        %v2360 = vperm.slane %v2352, %v2359
        %v2361 = vrot.slane %v2347, 4
        %v2362 = vsel %vm1698, %v2361, %v2301
        %v2363 = vrot.slane %v2301, 4
        %v2364 = vsel %vm1698, %v2347, %v2363
        %v2366 = vunpack.c.l.s4 1983009808
        %v2367 = vunpack.c.0.s8 %v2366
        %v2368 = vperm.slane %v2362, %v2367
        %v2370 = vunpack.c.l.s4 1983009808
        %v2371 = vunpack.c.0.s8 %v2370
        %v2372 = vperm.slane %v2364, %v2371
        %v2373 = vrot.slane %v2368, 4
        %v2374 = vsel %vm1698, %v2373, %v2356
        %v2375 = vrot.slane %v2356, 4
        %v2376 = vsel %vm1698, %v2368, %v2375
        %v2378 = vunpack.c.l.s4 1934713408
        %v2379 = vunpack.c.0.s8 %v2378
        %v2380 = vperm.slane %v2374, %v2379
        %v2382 = vunpack.c.l.s4 1934713408
        %v2383 = vunpack.c.0.s8 %v2382
        %v2384 = vperm.slane %v2376, %v2383
        %v2385 = vrot.slane %v2372, 4
        %v2386 = vsel %vm1698, %v2385, %v2360
        %v2387 = vrot.slane %v2360, 4
        %v2388 = vsel %vm1698, %v2372, %v2387
        %v2390 = vunpack.c.l.s4 1934713408
        %v2391 = vunpack.c.0.s8 %v2390
        %v2392 = vperm.slane %v2386, %v2391
        %v2394 = vunpack.c.l.s4 1934713408
        %v2395 = vunpack.c.0.s8 %v2394
        %v2396 = vperm.slane %v2388, %v2395
        %v2397 = vrot.slane %v2380, 4
        %v2398 = vsel %vm1698, 0.0, %v2397
        %v2399 = vrot.slane %v2384, 4
        %v2400 = vsel %vm1698, 0.0, %v2399
        %v2401 = vrot.slane %v2392, 4
        %v2402 = vsel %vm1698, 0.0, %v2401
        %v2403 = vrot.slane %v2396, 4
        %v2404 = vsel %vm1698, 0.0, %v2403
        %v2405 = vsel %vm1698, %v2399, %v2380
        %v2407 = vunpack.c.l.s4 1983009808
        %v2408 = vunpack.c.0.s8 %v2407
        %v2409 = vperm.slane %v2405, %v2408
        %v2410 = vrot.slane %v2400, 4
        %v2411 = vsel %vm1698, %v2410, %v2398
        %v2413 = vunpack.c.l.s4 1983009808
        %v2414 = vunpack.c.0.s8 %v2413
        %v2415 = vperm.slane %v2411, %v2414
        %v2416 = vsel %vm1698, %v2403, %v2392
        %v2418 = vunpack.c.l.s4 1983009808
        %v2419 = vunpack.c.0.s8 %v2418
        %v2420 = vperm.slane %v2416, %v2419
        %v2421 = vrot.slane %v2404, 4
        %v2422 = vsel %vm1698, %v2421, %v2402
        %v2424 = vunpack.c.l.s4 1983009808
        %v2425 = vunpack.c.0.s8 %v2424
        %v2426 = vperm.slane %v2422, %v2425
        %v2427 = vrot.slane %v2415, 4
        %v2428 = vsel %vm1698, %v2427, %v2409
        %v2429 = vrot.slane %v2409, 4
        %v2430 = vsel %vm1698, %v2415, %v2429
        %v2432 = vunpack.c.l.s4 1934713408
        %v2433 = vunpack.c.0.s8 %v2432
        %v2434 = vperm.slane %v2428, %v2433
        %v2436 = vunpack.c.l.s4 1934713408
        %v2437 = vunpack.c.0.s8 %v2436
        %v2438 = vperm.slane %v2430, %v2437
        %v2439 = vrot.slane %v2426, 4
        %v2440 = vsel %vm1698, %v2439, %v2420
        %v2441 = vrot.slane %v2420, 4
        %v2442 = vsel %vm1698, %v2426, %v2441
        %v2444 = vunpack.c.l.s4 1934713408
        %v2445 = vunpack.c.0.s8 %v2444
        %v2446 = vperm.slane %v2440, %v2445
        %v2448 = vunpack.c.l.s4 1934713408
        %v2449 = vunpack.c.0.s8 %v2448
        %v2450 = vperm.slane %v2442, %v2449
        %v2451 = vrot.slane %v2446, 4
        %v2452 = vsel %vm1698, %v2451, %v2434
        %v2453 = vrot.slane %v2434, 4
        %v2454 = vsel %vm1698, %v2446, %v2453
        %v2455 = vrot.slane %v2450, 4
        %v2456 = vsel %vm1698, %v2455, %v2438
        %v2457 = vrot.slane %v2438, 4
        %v2458 = vsel %vm1698, %v2450, %v2457
        %2460 = vrot.lane.b32.xlu0 %v2454, 8
        %v2461 = vpop.permute.xlu0 %2460
        %2464 = vrot.lane.b32.xlu0 %v2456, 16
        %v2465 = vpop.permute.xlu0 %2464
        %2468 = vrot.lane.b32.xlu0 %v2458, 24
        %v2469 = vpop.permute.xlu0 %2468
        %v2471 = vsel %vm2052, %v2452, %v2461
        %v2472 = vsel %vm787, %v2471, %v2465
        %vm2473 = vcmask 195584
        %v2474 = vsel %vm2473, %v2472, %v2469
        %v2475 = vld [vmem:[%s9] sm:$0xff]
        %v2476 = vld [vmem:[%s9 + $0x8] sm:$0xff]
        %v2477 = vld [vmem:[%s9 + $0x10] sm:$0xff]
        %v2478 = vld [vmem:[%s9 + $0x18] sm:$0xff]
        %v2479 = vperm.slane %v427, 7
        %v2481 = vsel %vm567, %v2474, 0
        %2483 = vmatpush.msra.mxu0 0.0
        %2484 = vmatpush.msra.mxu0 0.0
        %2485 = vmatpush.msra.mxu0 0.0
        %2486 = vmatpush.msra.mxu0 0.0
        %2487 = vmatpush.msra.mxu0 0.0
        %2488 = vmatpush.msra.mxu0 0.0
        %2489 = vmatpush.msra.mxu0 0.0
        %2490 = vmatpush.msra.mxu0 0.0
        %2491 = vmatpush.msra.mxu0 0.0
        %2492 = vmatpush.msra.mxu0 0.0
        %2493 = vmatpush.msra.mxu0 0.0
        %2494 = vmatpush.msra.mxu0 0.0
        %2495 = vmatpush.msra.mxu0 %v2478
        %2496 = vmatpush.msra.mxu0 %v2477
        %2497 = vmatpush.msra.mxu0 %v2476
        %2498 = vmatpush.msra.mxu0 %v2475
        %2499 = vmatmul.f32.gmra.mxu0 %v2481
        %v2500 = vpop.f32.mrf.mxu0
        %v2501 = vadd.f32 %v2479, %v2500
        %2502 = vdwg.mxu0
        %v2503 = vadd.f32 %v1655, %v2501
        %v2504 = vsel %vm567, %v2503, 0.0
        %2505 = vadd.xlane.f32.xlu0 %v2504
        %v2506 = vpop.xlane.xlu0 %2505
        %v2507 = vmul.f32 %v2506, %v1632
        %v2508 = vsub.f32 %v2503, %v2507
        %v2509 = vmul.f32 %v2508, %v2508
        %v2510 = vsel %vm567, %v2509, 0.0
        %2511 = vadd.xlane.f32.xlu0 %v2510
        %v2512 = vpop.xlane.xlu0 %2511
        %v2513 = vmul.f32 %v2512, %v1632
        %v2514 = vadd.f32 %v2513, 1e-05
        %v2515 = vrsqrt.pop %v2514
        %v2516 = vmul.f32 %v2515, %v2514
        %v2517 = vmul.f32 %v2516, %v2515
        %v2518 = vmul.f32 0.5, %v2517
        %v2519 = vsub.f32 1.5, %v2518
        %v2520 = vmul.f32 %v2515, %v2519
        %vm2521 = vweird.f32 %v2514
        %vm2522 = vweird.f32 %v2515
        %vm2523 = vmor %vm2521, %vm2522
        %v2524 = vsel %vm2523, %v2515, %v2520
        %v2525 = vmul.f32 %v2508, %v2524
        %v2526 = vperm.slane %v427, 5
        %v2527 = vmul.f32 %v2525, %v2526
        %v2528 = vperm.slane %v427, 6
        %v2529 = vadd.f32 %v2527, %v2528
        %v2530 = vsel %vm567, %v2529, 0.0
        %v2531 = vrot.slane %v2530, 4
        %v2532 = vadd.f32 %v2530, %v2531
        %v2533 = vrot.slane %v2532, 2
        %v2534 = vadd.f32 %v2532, %v2533
        %v2535 = vrot.slane %v2534, 1
        %v2536 = vadd.f32 %v2534, %v2535
        %v2537 = vmul.f32 %v2536, %v1621
        %v2538 = vld [vmem:[%s10] sm:$0xff]
        %v2539 = vld [vmem:[%s10 + $0x8] sm:$0xff]
        %v2540 = vld [vmem:[%s10 + $0x10] sm:$0xff]
        %v2541 = vld [vmem:[%s10 + $0x18] sm:$0xff]
        %v2542 = vld [vmem:[%s11] sm:$0x1]
        %v2544 = vsel %vm567, %v2537, 0
        %2546 = vmatpush.msra.mxu0 0.0
        %2547 = vmatpush.msra.mxu0 0.0
        %2548 = vmatpush.msra.mxu0 0.0
        %2549 = vmatpush.msra.mxu0 0.0
        %2550 = vmatpush.msra.mxu0 0.0
        %2551 = vmatpush.msra.mxu0 0.0
        %2552 = vmatpush.msra.mxu0 0.0
        %2553 = vmatpush.msra.mxu0 0.0
        %2554 = vmatpush.msra.mxu0 0.0
        %2555 = vmatpush.msra.mxu0 0.0
        %2556 = vmatpush.msra.mxu0 0.0
        %2557 = vmatpush.msra.mxu0 0.0
        %2558 = vmatpush.msra.mxu0 %v2541
        %2559 = vmatpush.msra.mxu0 %v2540
        %2560 = vmatpush.msra.mxu0 %v2539
        %2561 = vmatpush.msra.mxu0 %v2538
        %2562 = vmatmul.f32.gmra.mxu0 %v2544
        %v2563 = vpop.f32.mrf.mxu0
        %v2564 = vadd.f32 %v2542, %v2563
        %2565 = vdwg.mxu0
        %2566 = vst [vmem:[%s405] sm:$0x1] %v2564
        %s2567 = sand.u32 %s291, 1
        %s2568 = scalar_lea.sflag [#allocation4], %s2567
        %s2569 = sand.u32 %s291, 1
        %s2570 = scalar_lea.vmem [#allocation3], %s2569
        // Predicated region
        $region69: #{dfgar_forward.1} parent=67 // pred_check
          %p2571 = pneg %p301
        $region70: #{dfgar_forward.1} parent=67 // pred_check_branch
          %2573 = sbr.rel (%p2571) target = $region72
        $region71: #{dfgar_forward.1} parent=67 // pred_region
          %2575 = vsyncadd %s2568, 0
          %s2576 = scalar_lea.hbm %s12, %s26
          %s2578 = sshll.u32 %s2570, 4
          %s2579 = int_to_ptr.vmem [resolvable:$true] %s2578
          %s2580 = sshll.u32 %s2576, 4
          %s2581 = int_to_ptr.hbm [resolvable:$true] %s2580
          %2583 = dma.vmem_to_hbm [thread:$0]  %s2579, 16, %s2581, %s2568
        $region72: #{dfgar_forward.1} parent=67 // pred_fallthru
          _
      $region68: #{dfgar_forward.1} parent=5 // pred_fallthru
        _
      %p2584 = scmp.le.s32.totalorder 2, %s21
      // Predicated region
      $region73: #{dfgar_forward.1} parent=5 // pred_check
        %p2585 = pneg %p2584
      $region74: #{dfgar_forward.1} parent=5 // pred_check_branch
        %2587 = sbr.rel (%p2585) target = $region76
      $region75: #{dfgar_forward.1} parent=5 // pred_region
        %s2588 = ssub.s32 %s21, 2
        // Predicated region
        $region77: #{dfgar_forward.1} parent=75 // pred_check
          %p2589 = pneg %p307
        $region78: #{dfgar_forward.1} parent=75 // pred_check_branch
          %2591 = sbr.rel (%p2589) target = $region80
        $region79: #{dfgar_forward.1} parent=75 // pred_region
          %s2592 = sand.u32 %s292, 1
          %s2593 = scalar_lea.sflag [#allocation4], %s2592
          %s2594 = sand.u32 %s292, 1
          %s2595 = scalar_lea.vmem [#allocation3], %s2594
          %2597 = dma.done %s2593, 16
        $region80: #{dfgar_forward.1} parent=75 // pred_fallthru
          _
      $region76: #{dfgar_forward.1} parent=5 // pred_fallthru
        _
    $region6: #{dfgar_forward.1} parent=1 // loop_footer
      %s25 = sadd.s32 1, %s21
    $region7: #{dfgar_forward.1} parent=1 // loop_footer_branch
      %20 = sbr.rel target = $region3
    $region8: #{dfgar_forward.1} parent=1 // loop_exit
      _
    %2598 = vsyncpa [#allocation4], 1
    %s2599 = scalar_lea.sflag [#allocation4], 1
    %2600 = vsyncpa %s2599, 1

</llo_original>
